<compile_context>
chip_gen: v7x
topology: tpu7x:2x2x1
jax: 0.10.0
libtpu: 0.0.40
codegen_flags: <defaults>
</compile_context>

<pallas_src>
import jax
import jax.numpy as jnp
from jax.experimental import pallas as pl
from jax.experimental.pallas import tpu as pltpu

N_FREQ = 4          # n_frequencies
HIDDEN = 32         # hidden_dim
LATENT = 8          # dim_latent_code
N_OUT_DEF = 1       # n_output_deformations (kernel assumes 1, as in the module default)
SE3_EPS = 1e-4      # pytorch3d se3_exp_map eps (clamps squared rotation norm)


def se3field_kernel(p_ref, lat_ref, t0_ref, th_ref, hin_ref, hh_ref, hout_ref, out_ref):
    f32 = jnp.float32
    bf16 = jnp.bfloat16

    p = p_ref[...]            # (3, TB) f32, batch on lanes
    lat = lat_ref[...]        # (L, TB) f32

    def mm(w, x):
        return jnp.dot(w, x, preferred_element_type=f32)

    def relu(a):
        return jnp.maximum(a, 0.0)

    # --- Frequency encoding via angle doubling (one sin/cos over (3,TB), rest VPU) ---
    # freq j angle = (2**j) * pi * p ;  sin(2x)=2sc, cos(2x)=2c^2-1
    a0 = f32(jnp.pi) * p
    s = jnp.sin(a0)
    c = jnp.cos(a0)
    parts = [lat, s, c]
    for _ in range(N_FREQ - 1):
        s, c = 2.0 * (s * c), 2.0 * (c * c) - 1.0
        parts.append(s)
        parts.append(c)
    # enc rows: [latent(8) | sin0,cos0,sin1,cos1,sin2,cos2,sin3,cos3 (3 rows each)] = 32
    enc = jnp.concatenate(parts, axis=0).astype(bf16)          # (32, TB)

    # --- trunk MLP: one fused (32,32) first-layer dot, then 3 hidden ReLU layers ----
    h = relu(mm(t0_ref[...], enc))                             # (32, TB) f32
    for l in range(3):
        h = relu(mm(th_ref[l], h.astype(bf16)))
    trunk = h.astype(bf16)                                     # (32, TB)

    # --- fused w/v heads (block-diagonal): 32 -> 64 -> 64 -> 64 -> 6 ----------------
    H = relu(mm(hin_ref[...], trunk))                          # (64, TB)
    for l in range(2):
        H = relu(mm(hh_ref[l], H.astype(bf16)))
    WV = mm(hout_ref[...], H.astype(bf16))                     # (6, TB) f32
    w = WV[0:3, :]        # rotation log (w head output)
    v = WV[3:6, :]        # translation log (v head output)

    # --- SE3 exponential map epilogue on (3, TB) stacks ------------------------------
    # warped = R(w)^T p + V(w)^T v, with K = hat(w):
    #   R^T = I - (sin t / t) K + ((1 - cos t)/t^2) K^2
    #   V^T = I - ((1 - cos t)/t^2) K + ((t - sin t)/t^3) K^2
    def roll1(x):         # rows [1, 2, 0]
        return jnp.concatenate([x[1:3, :], x[0:1, :]], axis=0)

    def roll2(x):         # rows [2, 0, 1]
        return jnp.concatenate([x[2:3, :], x[0:2, :]], axis=0)

    w1 = roll1(w)
    w2 = roll2(w)

    def cross_w(b):       # w x b, all operands (3, TB) lane-dense stacks
        return w1 * roll2(b) - w2 * roll1(b)

    kp = cross_w(p)       # K p
    k2p = cross_w(kp)     # K^2 p
    kv = cross_w(v)       # K v
    k2v = cross_w(kv)     # K^2 v

    theta2 = jnp.maximum(jnp.sum(w * w, axis=0, keepdims=True), SE3_EPS)   # (1, TB)
    inv_t = jax.lax.rsqrt(theta2)              # one EUP pass (replaces sqrt + recip)
    theta = theta2 * inv_t
    sin_t = jnp.sin(theta)
    cos_t = jnp.cos(theta)
    inv_t2 = inv_t * inv_t
    fac1 = sin_t * inv_t
    fac2 = (1.0 - cos_t) * inv_t2
    fac3 = (theta - sin_t) * inv_t2 * inv_t

    # fac* are (1,TB); broadcast over the 3-sublane axis.
    warped = (p - fac1 * kp + fac2 * k2p) + (v - fac2 * kv + fac3 * k2v)   # (3, TB)
    # NaN fallback to the input point (per component, as in the module)
    warped = jnp.where(jnp.isnan(warped), p, warped)
    out_ref[...] = warped.astype(out_ref.dtype)                # lane-dense (3, TB) store


def init_params(key):
    """Deterministic weights matching the module's init stds (no biases, tcnn style),
    pre-packed for the fused feature-major kernel."""
    f32 = jnp.float32
    bf16 = jnp.bfloat16
    std_t, std_w, std_v = 0.1, 1e-4, 1e-3
    keys = jax.random.split(key, 10)

    # Fused first trunk layer: columns follow the in-kernel enc row order
    # [latent(8) | sin/cos pairs of 4 freqs (24)] -> (32, 32).
    enc_dim = LATENT + 6 * N_FREQ
    t0 = std_t * jax.random.normal(keys[0], (HIDDEN, enc_dim), f32)
    t_hidden = std_t * jax.random.normal(keys[1], (3, HIDDEN, HIDDEN), f32)

    # Heads fused block-diagonally: [w-head | v-head] -> 64-wide hidden, (6,64) output.
    w0 = std_w * jax.random.normal(keys[2], (HIDDEN, HIDDEN), f32)
    v0 = std_v * jax.random.normal(keys[3], (HIDDEN, HIDDEN), f32)
    head_in = jnp.concatenate([w0, v0], axis=0)                              # (64, 32)

    z = jnp.zeros((HIDDEN, HIDDEN), f32)
    hh = []
    for l in range(2):
        wl = std_w * jax.random.normal(keys[4 + l], (HIDDEN, HIDDEN), f32)
        vl = std_v * jax.random.normal(keys[6 + l], (HIDDEN, HIDDEN), f32)
        hh.append(jnp.concatenate(
            [jnp.concatenate([wl, z], axis=1),
             jnp.concatenate([z, vl], axis=1)], axis=0))
    head_hidden = jnp.stack(hh, axis=0)                                      # (2, 64, 64)

    w3 = std_w * jax.random.normal(keys[8], (3 * N_OUT_DEF, HIDDEN), f32)
    v3 = std_v * jax.random.normal(keys[9], (3 * N_OUT_DEF, HIDDEN), f32)
    zo = jnp.zeros((3 * N_OUT_DEF, HIDDEN), f32)
    head_out = jnp.concatenate(
        [jnp.concatenate([w3, zo], axis=1),
         jnp.concatenate([zo, v3], axis=1)], axis=0)                         # (6, 64)

    # bf16 matmul operands (f32 accumulation happens in-kernel).
    return [t0.astype(bf16), t_hidden.astype(bf16), head_in.astype(bf16),
            head_hidden.astype(bf16), head_out.astype(bf16)]


def _round_up(x, m):
    return ((x + m - 1) // m) * m


def se3_field_forward(points, latent_codes, params, *, block_b=4096):
    assert points.ndim == 2 and latent_codes.ndim == 2
    assert points.shape[0] == latent_codes.shape[0]
    assert points.shape[1] == 3
    B = points.shape[0]
    L = latent_codes.shape[1]

    # Batch tile: big enough to amortize per-grid-step / per-dot overhead, always a
    # multiple of 128 (dense lane dim).  If the whole batch would fit in one tile,
    # split it so the grid has >= 2 steps (keeps both TensorCores busy on v7x;
    # negligible cost on single-TC v5e/v6e).
    b128 = _round_up(B, 128)
    bb = min(block_b, b128)
    if bb == b128 and b128 >= 256:
        bb = _round_up(pl.cdiv(b128, 2), 128)
    Bp = _round_up(B, bb)
    grid = Bp // bb

    # Feature-major (batch-on-lanes) layout; only pad the ragged tail (zero rows are
    # benign: no-bias MLP, finite outputs, sliced off below).
    p_t = points.T.astype(jnp.float32)                 # (3, B)
    l_t = latent_codes.T.astype(jnp.float32)           # (L, B)
    if Bp != B:
        p_t = jnp.pad(p_t, ((0, 0), (0, Bp - B)))
        l_t = jnp.pad(l_t, ((0, 0), (0, Bp - B)))

    weight_specs = [
        pl.BlockSpec(w.shape, (lambda i, _nd=w.ndim: (0,) * _nd)) for w in params
    ]
    in_specs = [pl.BlockSpec((3, bb), lambda i: (0, i)),
                pl.BlockSpec((L, bb), lambda i: (0, i))] + weight_specs
    out_spec = pl.BlockSpec((3, bb), lambda i: (0, i))

    out_t = pl.pallas_call(
        se3field_kernel,
        out_shape=jax.ShapeDtypeStruct((3, Bp), points.dtype),
        grid=(grid,),
        in_specs=in_specs,
        out_specs=out_spec,
        compiler_params=pltpu.CompilerParams(
            dimension_semantics=("parallel",),
            # Live intermediates are ~<16 MiB even at bb=8192; 32 MiB scoped is safe
            # on every chip (v7x physical VMEM is 64 MiB) with ample headroom.
            vmem_limit_bytes=32 * 1024 * 1024),
    )(p_t, l_t, *params)

    out = out_t if Bp == B else out_t[:, :B]
    # TODO(synk): caller-side batch-major (B,3) API forces this final transpose; keep
    #             data feature-major end-to-end in the caller to drop it.
    return out.T.astype(points.dtype)


if __name__ == "__main__":
    key = jax.random.PRNGKey(0)
    kp, kl, kw = jax.random.split(key, 3)
    B = 256
    points = jax.random.normal(kp, (B, 3), dtype=jnp.float32)
    latent_codes = jax.random.normal(kl, (B, LATENT), dtype=jnp.float32)
    params = init_params(kw)

    warped = se3_field_forward(points, latent_codes, params)
    jax.block_until_ready(warped)
    assert warped.shape == (B, 3)
    assert warped.dtype == points.dtype
    assert bool(jnp.all(jnp.isfinite(warped)))
    print("KERNEL_OK")
</pallas_src>

<mosaic_0001>
module attributes {stable_mosaic.version = 11 : i64} {
  func.func @se3field_kernel(%arg0: i32, %arg1: memref<3x128xf32, #tpu.memory_space<vmem>>, %arg2: memref<8x128xf32, #tpu.memory_space<vmem>>, %arg3: memref<32x32xbf16, #tpu.memory_space<vmem>>, %arg4: memref<3x32x32xbf16, #tpu.memory_space<vmem>>, %arg5: memref<64x32xbf16, #tpu.memory_space<vmem>>, %arg6: memref<2x64x64xbf16, #tpu.memory_space<vmem>>, %arg7: memref<6x64xbf16, #tpu.memory_space<vmem>>, %arg8: memref<3x128xf32, #tpu.memory_space<vmem>>) attributes {dimension_semantics = [#tpu.dimension_semantics<parallel>], iteration_bounds = array<i64: 2>, scalar_prefetch = 0 : i64, scratch_operands = 0 : i64, tpu.core_type = #tpu.core_type<tc>, window_params = [{transform_indices = @transform_0, window_bounds = array<i64: 3, 128>}, {transform_indices = @transform_1, window_bounds = array<i64: 8, 128>}, {pipeline_mode = #tpu.pipeline_mode<synchronous>, transform_indices = @transform_2, window_bounds = array<i64: 32, 32>}, {pipeline_mode = #tpu.pipeline_mode<synchronous>, transform_indices = @transform_3, window_bounds = array<i64: 3, 32, 32>}, {pipeline_mode = #tpu.pipeline_mode<synchronous>, transform_indices = @transform_4, window_bounds = array<i64: 64, 32>}, {pipeline_mode = #tpu.pipeline_mode<synchronous>, transform_indices = @transform_5, window_bounds = array<i64: 2, 64, 64>}, {pipeline_mode = #tpu.pipeline_mode<synchronous>, transform_indices = @transform_6, window_bounds = array<i64: 6, 64>}, {transform_indices = @transform_7, window_bounds = array<i64: 3, 128>}]} {
    %c0 = arith.constant 0 : index
    %c0_0 = arith.constant 0 : index
    %0 = vector.load %arg1[%c0, %c0_0] : memref<3x128xf32, #tpu.memory_space<vmem>>, vector<3x128xf32>
    %c0_1 = arith.constant 0 : index
    %c0_2 = arith.constant 0 : index
    %1 = vector.load %arg2[%c0_1, %c0_2] : memref<8x128xf32, #tpu.memory_space<vmem>>, vector<8x128xf32>
    %cst = arith.constant 3.14159274 : f32
    %2 = vector.broadcast %cst : f32 to vector<3x128xf32>
    %3 = arith.mulf %2, %0 : vector<3x128xf32>
    %4 = math.sin %3 : vector<3x128xf32>
    %5 = math.cos %3 : vector<3x128xf32>
    %6 = arith.mulf %4, %5 : vector<3x128xf32>
    %cst_3 = arith.constant 2.000000e+00 : f32
    %7 = vector.broadcast %cst_3 : f32 to vector<3x128xf32>
    %8 = arith.mulf %7, %6 : vector<3x128xf32>
    %9 = arith.mulf %5, %5 : vector<3x128xf32>
    %cst_4 = arith.constant 2.000000e+00 : f32
    %10 = vector.broadcast %cst_4 : f32 to vector<3x128xf32>
    %11 = arith.mulf %10, %9 : vector<3x128xf32>
    %cst_5 = arith.constant 1.000000e+00 : f32
    %12 = vector.broadcast %cst_5 : f32 to vector<3x128xf32>
    %13 = arith.subf %11, %12 : vector<3x128xf32>
    %14 = arith.mulf %8, %13 : vector<3x128xf32>
    %cst_6 = arith.constant 2.000000e+00 : f32
    %15 = vector.broadcast %cst_6 : f32 to vector<3x128xf32>
    %16 = arith.mulf %15, %14 : vector<3x128xf32>
    %17 = arith.mulf %13, %13 : vector<3x128xf32>
    %cst_7 = arith.constant 2.000000e+00 : f32
    %18 = vector.broadcast %cst_7 : f32 to vector<3x128xf32>
    %19 = arith.mulf %18, %17 : vector<3x128xf32>
    %cst_8 = arith.constant 1.000000e+00 : f32
    %20 = vector.broadcast %cst_8 : f32 to vector<3x128xf32>
    %21 = arith.subf %19, %20 : vector<3x128xf32>
    %22 = arith.mulf %16, %21 : vector<3x128xf32>
    %cst_9 = arith.constant 2.000000e+00 : f32
    %23 = vector.broadcast %cst_9 : f32 to vector<3x128xf32>
    %24 = arith.mulf %23, %22 : vector<3x128xf32>
    %25 = arith.mulf %21, %21 : vector<3x128xf32>
    %cst_10 = arith.constant 2.000000e+00 : f32
    %26 = vector.broadcast %cst_10 : f32 to vector<3x128xf32>
    %27 = arith.mulf %26, %25 : vector<3x128xf32>
    %cst_11 = arith.constant 1.000000e+00 : f32
    %28 = vector.broadcast %cst_11 : f32 to vector<3x128xf32>
    %29 = arith.subf %27, %28 : vector<3x128xf32>
    %30 = tpu.concatenate %1, %4, %5, %8, %13, %16, %21, %24, %29 in 0 : vector<8x128xf32>, vector<3x128xf32>, vector<3x128xf32>, vector<3x128xf32>, vector<3x128xf32>, vector<3x128xf32>, vector<3x128xf32>, vector<3x128xf32>, vector<3x128xf32> -> vector<32x128xf32>
    %31 = arith.truncf %30 : vector<32x128xf32> to vector<32x128xbf16>
    %c0_12 = arith.constant 0 : index
    %c0_13 = arith.constant 0 : index
    %32 = vector.load %arg3[%c0_12, %c0_13] : memref<32x32xbf16, #tpu.memory_space<vmem>>, vector<32x32xbf16>
    %cst_14 = arith.constant dense<0.000000e+00> : vector<32x128xf32>
    %33 = tpu.matmul %32, %31, %cst_14 {dimension_numbers = #tpu.dot_dimension_numbers<[1], [0], [0], [1], [0, 0, 1, 1], [], []>} : vector<32x32xbf16>, vector<32x128xbf16>, vector<32x128xf32> -> vector<32x128xf32>
    %cst_15 = arith.constant 0.000000e+00 : f32
    %34 = vector.broadcast %cst_15 : f32 to vector<32x128xf32>
    %35 = arith.maximumf %33, %34 : vector<32x128xf32>
    %c0_16 = arith.constant 0 : index
    %c0_17 = arith.constant 0 : index
    %c0_18 = arith.constant 0 : index
    %36 = vector.load %arg4[%c0_16, %c0_17, %c0_18] : memref<3x32x32xbf16, #tpu.memory_space<vmem>>, vector<1x32x32xbf16>
    %37 = vector.shape_cast %36 : vector<1x32x32xbf16> to vector<32x32xbf16>
    %38 = arith.truncf %35 : vector<32x128xf32> to vector<32x128xbf16>
    %cst_19 = arith.constant dense<0.000000e+00> : vector<32x128xf32>
    %39 = tpu.matmul %37, %38, %cst_19 {dimension_numbers = #tpu.dot_dimension_numbers<[1], [0], [0], [1], [0, 0, 1, 1], [], []>} : vector<32x32xbf16>, vector<32x128xbf16>, vector<32x128xf32> -> vector<32x128xf32>
    %cst_20 = arith.constant 0.000000e+00 : f32
    %40 = vector.broadcast %cst_20 : f32 to vector<32x128xf32>
    %41 = arith.maximumf %39, %40 : vector<32x128xf32>
    %c1 = arith.constant 1 : index
    %c0_21 = arith.constant 0 : index
    %c0_22 = arith.constant 0 : index
    %42 = vector.load %arg4[%c1, %c0_21, %c0_22] : memref<3x32x32xbf16, #tpu.memory_space<vmem>>, vector<1x32x32xbf16>
    %43 = vector.shape_cast %42 : vector<1x32x32xbf16> to vector<32x32xbf16>
    %44 = arith.truncf %41 : vector<32x128xf32> to vector<32x128xbf16>
    %cst_23 = arith.constant dense<0.000000e+00> : vector<32x128xf32>
    %45 = tpu.matmul %43, %44, %cst_23 {dimension_numbers = #tpu.dot_dimension_numbers<[1], [0], [0], [1], [0, 0, 1, 1], [], []>} : vector<32x32xbf16>, vector<32x128xbf16>, vector<32x128xf32> -> vector<32x128xf32>
    %cst_24 = arith.constant 0.000000e+00 : f32
    %46 = vector.broadcast %cst_24 : f32 to vector<32x128xf32>
    %47 = arith.maximumf %45, %46 : vector<32x128xf32>
    %c2 = arith.constant 2 : index
    %c0_25 = arith.constant 0 : index
    %c0_26 = arith.constant 0 : index
    %48 = vector.load %arg4[%c2, %c0_25, %c0_26] : memref<3x32x32xbf16, #tpu.memory_space<vmem>>, vector<1x32x32xbf16>
    %49 = vector.shape_cast %48 : vector<1x32x32xbf16> to vector<32x32xbf16>
    %50 = arith.truncf %47 : vector<32x128xf32> to vector<32x128xbf16>
    %cst_27 = arith.constant dense<0.000000e+00> : vector<32x128xf32>
    %51 = tpu.matmul %49, %50, %cst_27 {dimension_numbers = #tpu.dot_dimension_numbers<[1], [0], [0], [1], [0, 0, 1, 1], [], []>} : vector<32x32xbf16>, vector<32x128xbf16>, vector<32x128xf32> -> vector<32x128xf32>
    %cst_28 = arith.constant 0.000000e+00 : f32
    %52 = vector.broadcast %cst_28 : f32 to vector<32x128xf32>
    %53 = arith.maximumf %51, %52 : vector<32x128xf32>
    %54 = arith.truncf %53 : vector<32x128xf32> to vector<32x128xbf16>
    %c0_29 = arith.constant 0 : index
    %c0_30 = arith.constant 0 : index
    %55 = vector.load %arg5[%c0_29, %c0_30] : memref<64x32xbf16, #tpu.memory_space<vmem>>, vector<64x32xbf16>
    %cst_31 = arith.constant dense<0.000000e+00> : vector<64x128xf32>
    %56 = tpu.matmul %55, %54, %cst_31 {dimension_numbers = #tpu.dot_dimension_numbers<[1], [0], [0], [1], [0, 0, 1, 1], [], []>} : vector<64x32xbf16>, vector<32x128xbf16>, vector<64x128xf32> -> vector<64x128xf32>
    %cst_32 = arith.constant 0.000000e+00 : f32
    %57 = vector.broadcast %cst_32 : f32 to vector<64x128xf32>
    %58 = arith.maximumf %56, %57 : vector<64x128xf32>
    %c0_33 = arith.constant 0 : index
    %c0_34 = arith.constant 0 : index
    %c0_35 = arith.constant 0 : index
    %59 = vector.load %arg6[%c0_33, %c0_34, %c0_35] : memref<2x64x64xbf16, #tpu.memory_space<vmem>>, vector<1x64x64xbf16>
    %60 = vector.shape_cast %59 : vector<1x64x64xbf16> to vector<64x64xbf16>
    %61 = arith.truncf %58 : vector<64x128xf32> to vector<64x128xbf16>
    %cst_36 = arith.constant dense<0.000000e+00> : vector<64x128xf32>
    %62 = tpu.matmul %60, %61, %cst_36 {dimension_numbers = #tpu.dot_dimension_numbers<[1], [0], [0], [1], [0, 0, 1, 1], [], []>} : vector<64x64xbf16>, vector<64x128xbf16>, vector<64x128xf32> -> vector<64x128xf32>
    %cst_37 = arith.constant 0.000000e+00 : f32
    %63 = vector.broadcast %cst_37 : f32 to vector<64x128xf32>
    %64 = arith.maximumf %62, %63 : vector<64x128xf32>
    %c1_38 = arith.constant 1 : index
    %c0_39 = arith.constant 0 : index
    %c0_40 = arith.constant 0 : index
    %65 = vector.load %arg6[%c1_38, %c0_39, %c0_40] : memref<2x64x64xbf16, #tpu.memory_space<vmem>>, vector<1x64x64xbf16>
    %66 = vector.shape_cast %65 : vector<1x64x64xbf16> to vector<64x64xbf16>
    %67 = arith.truncf %64 : vector<64x128xf32> to vector<64x128xbf16>
    %cst_41 = arith.constant dense<0.000000e+00> : vector<64x128xf32>
    %68 = tpu.matmul %66, %67, %cst_41 {dimension_numbers = #tpu.dot_dimension_numbers<[1], [0], [0], [1], [0, 0, 1, 1], [], []>} : vector<64x64xbf16>, vector<64x128xbf16>, vector<64x128xf32> -> vector<64x128xf32>
    %cst_42 = arith.constant 0.000000e+00 : f32
    %69 = vector.broadcast %cst_42 : f32 to vector<64x128xf32>
    %70 = arith.maximumf %68, %69 : vector<64x128xf32>
    %c0_43 = arith.constant 0 : index
    %c0_44 = arith.constant 0 : index
    %71 = vector.load %arg7[%c0_43, %c0_44] : memref<6x64xbf16, #tpu.memory_space<vmem>>, vector<6x64xbf16>
    %72 = arith.truncf %70 : vector<64x128xf32> to vector<64x128xbf16>
    %cst_45 = arith.constant dense<0.000000e+00> : vector<6x128xf32>
    %73 = tpu.matmul %71, %72, %cst_45 {dimension_numbers = #tpu.dot_dimension_numbers<[1], [0], [0], [1], [0, 0, 1, 1], [], []>} : vector<6x64xbf16>, vector<64x128xbf16>, vector<6x128xf32> -> vector<6x128xf32>
    %74 = vector.extract_strided_slice %73 {offsets = [0, 0], sizes = [3, 128], strides = [1, 1]} : vector<6x128xf32> to vector<3x128xf32>
    %75 = vector.extract_strided_slice %73 {offsets = [3, 0], sizes = [3, 128], strides = [1, 1]} : vector<6x128xf32> to vector<3x128xf32>
    %76 = vector.extract_strided_slice %74 {offsets = [1, 0], sizes = [2, 128], strides = [1, 1]} : vector<3x128xf32> to vector<2x128xf32>
    %77 = vector.extract_strided_slice %74 {offsets = [0, 0], sizes = [1, 128], strides = [1, 1]} : vector<3x128xf32> to vector<1x128xf32>
    %78 = tpu.concatenate %76, %77 in 0 : vector<2x128xf32>, vector<1x128xf32> -> vector<3x128xf32>
    %79 = vector.extract_strided_slice %74 {offsets = [2, 0], sizes = [1, 128], strides = [1, 1]} : vector<3x128xf32> to vector<1x128xf32>
    %80 = vector.extract_strided_slice %74 {offsets = [0, 0], sizes = [2, 128], strides = [1, 1]} : vector<3x128xf32> to vector<2x128xf32>
    %81 = tpu.concatenate %79, %80 in 0 : vector<1x128xf32>, vector<2x128xf32> -> vector<3x128xf32>
    %82 = vector.extract_strided_slice %0 {offsets = [2, 0], sizes = [1, 128], strides = [1, 1]} : vector<3x128xf32> to vector<1x128xf32>
    %83 = vector.extract_strided_slice %0 {offsets = [0, 0], sizes = [2, 128], strides = [1, 1]} : vector<3x128xf32> to vector<2x128xf32>
    %84 = tpu.concatenate %82, %83 in 0 : vector<1x128xf32>, vector<2x128xf32> -> vector<3x128xf32>
    %85 = arith.mulf %78, %84 : vector<3x128xf32>
    %86 = vector.extract_strided_slice %0 {offsets = [1, 0], sizes = [2, 128], strides = [1, 1]} : vector<3x128xf32> to vector<2x128xf32>
    %87 = vector.extract_strided_slice %0 {offsets = [0, 0], sizes = [1, 128], strides = [1, 1]} : vector<3x128xf32> to vector<1x128xf32>
    %88 = tpu.concatenate %86, %87 in 0 : vector<2x128xf32>, vector<1x128xf32> -> vector<3x128xf32>
    %89 = arith.mulf %81, %88 : vector<3x128xf32>
    %90 = arith.subf %85, %89 : vector<3x128xf32>
    %91 = vector.extract_strided_slice %90 {offsets = [2, 0], sizes = [1, 128], strides = [1, 1]} : vector<3x128xf32> to vector<1x128xf32>
    %92 = vector.extract_strided_slice %90 {offsets = [0, 0], sizes = [2, 128], strides = [1, 1]} : vector<3x128xf32> to vector<2x128xf32>
    %93 = tpu.concatenate %91, %92 in 0 : vector<1x128xf32>, vector<2x128xf32> -> vector<3x128xf32>
    %94 = arith.mulf %78, %93 : vector<3x128xf32>
    %95 = vector.extract_strided_slice %90 {offsets = [1, 0], sizes = [2, 128], strides = [1, 1]} : vector<3x128xf32> to vector<2x128xf32>
    %96 = vector.extract_strided_slice %90 {offsets = [0, 0], sizes = [1, 128], strides = [1, 1]} : vector<3x128xf32> to vector<1x128xf32>
    %97 = tpu.concatenate %95, %96 in 0 : vector<2x128xf32>, vector<1x128xf32> -> vector<3x128xf32>
    %98 = arith.mulf %81, %97 : vector<3x128xf32>
    %99 = arith.subf %94, %98 : vector<3x128xf32>
    %100 = vector.extract_strided_slice %75 {offsets = [2, 0], sizes = [1, 128], strides = [1, 1]} : vector<3x128xf32> to vector<1x128xf32>
    %101 = vector.extract_strided_slice %75 {offsets = [0, 0], sizes = [2, 128], strides = [1, 1]} : vector<3x128xf32> to vector<2x128xf32>
    %102 = tpu.concatenate %100, %101 in 0 : vector<1x128xf32>, vector<2x128xf32> -> vector<3x128xf32>
    %103 = arith.mulf %78, %102 : vector<3x128xf32>
    %104 = vector.extract_strided_slice %75 {offsets = [1, 0], sizes = [2, 128], strides = [1, 1]} : vector<3x128xf32> to vector<2x128xf32>
    %105 = vector.extract_strided_slice %75 {offsets = [0, 0], sizes = [1, 128], strides = [1, 1]} : vector<3x128xf32> to vector<1x128xf32>
    %106 = tpu.concatenate %104, %105 in 0 : vector<2x128xf32>, vector<1x128xf32> -> vector<3x128xf32>
    %107 = arith.mulf %81, %106 : vector<3x128xf32>
    %108 = arith.subf %103, %107 : vector<3x128xf32>
    %109 = vector.extract_strided_slice %108 {offsets = [2, 0], sizes = [1, 128], strides = [1, 1]} : vector<3x128xf32> to vector<1x128xf32>
    %110 = vector.extract_strided_slice %108 {offsets = [0, 0], sizes = [2, 128], strides = [1, 1]} : vector<3x128xf32> to vector<2x128xf32>
    %111 = tpu.concatenate %109, %110 in 0 : vector<1x128xf32>, vector<2x128xf32> -> vector<3x128xf32>
    %112 = arith.mulf %78, %111 : vector<3x128xf32>
    %113 = vector.extract_strided_slice %108 {offsets = [1, 0], sizes = [2, 128], strides = [1, 1]} : vector<3x128xf32> to vector<2x128xf32>
    %114 = vector.extract_strided_slice %108 {offsets = [0, 0], sizes = [1, 128], strides = [1, 1]} : vector<3x128xf32> to vector<1x128xf32>
    %115 = tpu.concatenate %113, %114 in 0 : vector<2x128xf32>, vector<1x128xf32> -> vector<3x128xf32>
    %116 = arith.mulf %81, %115 : vector<3x128xf32>
    %117 = arith.subf %112, %116 : vector<3x128xf32>
    %118 = arith.mulf %74, %74 : vector<3x128xf32>
    %cst_46 = arith.constant dense<0.000000e+00> : vector<128xf32>
    %119 = vector.multi_reduction <add>, %118, %cst_46 [0] : vector<3x128xf32> to vector<128xf32>
    %120 = vector.shape_cast %119 : vector<128xf32> to vector<1x128xf32>
    %cst_47 = arith.constant 9.99999974E-5 : f32
    %121 = vector.broadcast %cst_47 : f32 to vector<1x128xf32>
    %122 = arith.maximumf %120, %121 : vector<1x128xf32>
    %123 = math.rsqrt %122 : vector<1x128xf32>
    %124 = arith.mulf %122, %123 : vector<1x128xf32>
    %125 = math.sin %124 : vector<1x128xf32>
    %126 = math.cos %124 : vector<1x128xf32>
    %127 = arith.mulf %123, %123 : vector<1x128xf32>
    %128 = arith.mulf %125, %123 : vector<1x128xf32>
    %cst_48 = arith.constant 1.000000e+00 : f32
    %129 = vector.broadcast %cst_48 : f32 to vector<1x128xf32>
    %130 = arith.subf %129, %126 : vector<1x128xf32>
    %131 = arith.mulf %130, %127 : vector<1x128xf32>
    %132 = arith.subf %124, %125 : vector<1x128xf32>
    %133 = arith.mulf %132, %127 : vector<1x128xf32>
    %134 = arith.mulf %133, %123 : vector<1x128xf32>
    %135 = vector.broadcast %128 : vector<1x128xf32> to vector<3x128xf32>
    %136 = arith.mulf %135, %90 : vector<3x128xf32>
    %137 = arith.subf %0, %136 : vector<3x128xf32>
    %138 = vector.broadcast %131 : vector<1x128xf32> to vector<3x128xf32>
    %139 = arith.mulf %138, %99 : vector<3x128xf32>
    %140 = arith.addf %137, %139 : vector<3x128xf32>
    %141 = vector.broadcast %131 : vector<1x128xf32> to vector<3x128xf32>
    %142 = arith.mulf %141, %108 : vector<3x128xf32>
    %143 = arith.subf %75, %142 : vector<3x128xf32>
    %144 = vector.broadcast %134 : vector<1x128xf32> to vector<3x128xf32>
    %145 = arith.mulf %144, %117 : vector<3x128xf32>
    %146 = arith.addf %143, %145 : vector<3x128xf32>
    %147 = arith.addf %140, %146 : vector<3x128xf32>
    %148 = arith.cmpf one, %147, %147 : vector<3x128xf32>
    %149 = arith.select %148, %0, %147 : vector<3x128xi1>, vector<3x128xf32>
    %c0_49 = arith.constant 0 : index
    %c0_50 = arith.constant 0 : index
    %150 = vector.load %arg8[%c0_49, %c0_50] : memref<3x128xf32, #tpu.memory_space<vmem>>, vector<3x128xf32>
    tpu.vector_store %arg8[%c0_49, %c0_50], %149 {strides = array<i32>} : memref<3x128xf32, #tpu.memory_space<vmem>>, vector<3x128xf32>,
    return
  }
  func.func @transform_0(%arg0: i32) -> (i32, i32) {
    %c0_i32 = arith.constant 0 : i32
    %c0_i32_0 = arith.constant 0 : i32
    return %c0_i32, %arg0 : i32, i32
  }
  func.func @transform_1(%arg0: i32) -> (i32, i32) {
    %c0_i32 = arith.constant 0 : i32
    %c0_i32_0 = arith.constant 0 : i32
    return %c0_i32, %arg0 : i32, i32
  }
  func.func @transform_2(%arg0: i32) -> (i32, i32) {
    %c0_i32 = arith.constant 0 : i32
    %c0_i32_0 = arith.constant 0 : i32
    %c0_i32_1 = arith.constant 0 : i32
    return %c0_i32, %c0_i32_0 : i32, i32
  }
  func.func @transform_3(%arg0: i32) -> (i32, i32, i32) {
    %c0_i32 = arith.constant 0 : i32
    %c0_i32_0 = arith.constant 0 : i32
    %c0_i32_1 = arith.constant 0 : i32
    %c0_i32_2 = arith.constant 0 : i32
    return %c0_i32, %c0_i32_0, %c0_i32_1 : i32, i32, i32
  }
  func.func @transform_4(%arg0: i32) -> (i32, i32) {
    %c0_i32 = arith.constant 0 : i32
    %c0_i32_0 = arith.constant 0 : i32
    %c0_i32_1 = arith.constant 0 : i32
    return %c0_i32, %c0_i32_0 : i32, i32
  }
  func.func @transform_5(%arg0: i32) -> (i32, i32, i32) {
    %c0_i32 = arith.constant 0 : i32
    %c0_i32_0 = arith.constant 0 : i32
    %c0_i32_1 = arith.constant 0 : i32
    %c0_i32_2 = arith.constant 0 : i32
    return %c0_i32, %c0_i32_0, %c0_i32_1 : i32, i32, i32
  }
  func.func @transform_6(%arg0: i32) -> (i32, i32) {
    %c0_i32 = arith.constant 0 : i32
    %c0_i32_0 = arith.constant 0 : i32
    %c0_i32_1 = arith.constant 0 : i32
    return %c0_i32, %c0_i32_0 : i32, i32
  }
  func.func @transform_7(%arg0: i32) -> (i32, i32) {
    %c0_i32 = arith.constant 0 : i32
    %c0_i32_0 = arith.constant 0 : i32
    return %c0_i32, %arg0 : i32, i32
  }
}

</mosaic_0001>

<llo_original>
// kernel: tpu_custom_call.1
$region0: #{tpu_custom_call.1}
  #allocation0 [shape = 'u32[]', space=smem, size = 0x4, offset = 0x4, fixed_abs, tag = 'smem constant byte address 0x4 - core index']
  #allocation1 [shape = 'u32[144,128]{1,0:T(1,128)}', space=vmem, size = 0x12000, scoped, tag = 'internal scratch']
  %s0 = inlined_call_operand.hbm [shape: f32[3,256], index: 0, kind: input, shape index: {}]
  %s1 = inlined_call_operand.hbm [shape: f32[8,256], index: 1, kind: input, shape index: {}]
  %s2 = inlined_call_operand.hbm [shape: bf16[32,32], index: 2, kind: input, shape index: {}]
  %s3 = inlined_call_operand.hbm [shape: bf16[3,32,32], index: 3, kind: input, shape index: {}]
  %s4 = inlined_call_operand.vmem [shape: bf16[64,32], index: 4, kind: input, shape index: {}]
  %s5 = inlined_call_operand.vmem [shape: bf16[2,64,64], index: 5, kind: input, shape index: {}]
  %s6 = inlined_call_operand.vmem [shape: bf16[6,64], index: 6, kind: input, shape index: {}]
  %s7 = inlined_call_operand.hbm [shape: f32[3,256], index: 7, kind: output, shape index: {}]
  %s8 = sld [smem:[#allocation0]]
  $region77: #{tpu_custom_call.1} parent=0
    _
  %s10 = ssub.s32 1, %s8
  %s11 = scalar_select 0, %s10, %s8
  $region1: #{tpu_custom_call.1} parent=0
    #allocation2 [shape = 'u8[4096]{0}', space=vmem, size = 0x1000, scoped, tag = 'input window, operand 0']
    #allocation3 [shape = 's32[2]{0}', space=sflag, size = 0x8, scoped, tag = 'scoped memory for tpu_custom_call.1']
    #allocation4 [shape = 's32[2]{0}', space=sflag, size = 0x8, scoped, tag = 'scoped memory for tpu_custom_call.1']
    #allocation5 [shape = 'u8[8192]{0}', space=vmem, size = 0x2000, scoped, tag = 'input window, operand 1']
    #allocation6 [shape = 's32[2]{0}', space=sflag, size = 0x8, scoped, tag = 'scoped memory for tpu_custom_call.1']
    #allocation7 [shape = 'u8[8192]{0}', space=vmem, size = 0x2000, scoped, tag = 'input window, operand 2, single buffered']
    #allocation8 [shape = 'u8[24576]{0}', space=vmem, size = 0x6000, scoped, tag = 'input window, operand 3, single buffered']
    #allocation9 [shape = 's32[1]{0}', space=sflag, size = 0x4, scoped, tag = 'scoped memory for tpu_custom_call.1']
    #allocation10 [shape = 'u8[4096]{0}', space=vmem, size = 0x1000, scoped, tag = 'output window, operand 0']
    %12 = vsyncpa [#allocation3], 0
    %s13 = scalar_lea.sflag [#allocation3], 1
    %14 = vsyncpa %s13, 0
    %15 = vsyncpa [#allocation6], 0
    %s16 = scalar_lea.sflag [#allocation6], 1
    %17 = vsyncpa %s16, 0
    %18 = vsyncpa [#allocation9], 0
    %19 = vsyncpa [#allocation4], 0
    %s20 = scalar_lea.sflag [#allocation4], 1
    %21 = vsyncpa %s20, 0
    loop: start=0, step=1, limit=4
    $region2: #{tpu_custom_call.1} parent=1 // loop_pre_header
      _
    $region3: #{tpu_custom_call.1} parent=1 // loop_header
      %s23 = sphi 0, %s27
      %p24 = scmp.ge.s32.totalorder %s23, 4
      %s33 = sphi 0, %s35
      %s36 = sphi 0, %s33
      %s37 = sphi 0, %s36
      %s53 = sphi 0, %s37
      %s59 = sphi 0, %s61
      %s62 = sphi 0, %s59
      %s63 = sphi 0, %s62
      %s79 = sphi 0, %s63
      %s83 = sphi 0, %s83
      %s85 = sphi 0, %s83
      %s86 = sphi 0, %s85
      %s100 = sphi 0, %s86
      %s104 = sphi 0, %s104
      %s106 = sphi 0, %s104
      %s107 = sphi 0, %s106
      %s121 = sphi 0, %s107
      %s125 = sphi 0, %s125
      %s127 = sphi 0, %s125
      %s128 = sphi 0, %s127
      %s142 = sphi 0, %s128
      %s146 = sphi 0, %s146
      %s148 = sphi 0, %s146
      %s149 = sphi 0, %s148
      %s163 = sphi 0, %s149
      %s167 = sphi 0, %s167
      %s169 = sphi 0, %s167
      %s170 = sphi 0, %s169
      %s184 = sphi 0, %s170
      %s190 = sphi 0, %s192
      %s193 = sphi 0, %s190
      %s194 = sphi 0, %s193
      %s210 = sphi 0, %s194
    $region4: #{tpu_custom_call.1} parent=1 // loop_header_branch
      %26 = sbr.rel (%p24) target = $region8
    $region5: #{tpu_custom_call.1} parent=1 // loop_body
      %s28 = ssub.s32 %s23, 1
      %s29 = ssub.s32 %s23, 2
      %s30 = sadd.s32 %s23, 1
      %s31 = ssub.s32 %s23, %s30
      %p32 = scmp.eq.s32.totalorder %s31, 0
      %s34 = sadd.s32 %s33, 1
      %s35 = scalar_select %p32, %s33, %s34
      %p38 = pneg %p32
      %p39 = scmp.eq.s32.totalorder %s23, 1
      %p40 = por %p38, %p39
      %p41 = scmp.ne.s32.totalorder %s33, %s36
      %p42 = scmp.eq.s32.totalorder %s23, 0
      %p43 = por %p41, %p42
      %p44 = scmp.ne.s32.totalorder %s33, %s36
      %p45 = scmp.eq.s32.totalorder %s28, 1
      %p46 = por %p44, %p45
      %p47 = scmp.ne.s32.totalorder %s36, %s37
      %p48 = scmp.eq.s32.totalorder %s28, 0
      %p49 = por %p47, %p48
      %p50 = scmp.ne.s32.totalorder %s36, %s37
      %p51 = scmp.eq.s32.totalorder %s29, 1
      %p52 = por %p50, %p51
      %p54 = scmp.ne.s32.totalorder %s37, %s53
      %p55 = scmp.eq.s32.totalorder %s29, 0
      %p56 = por %p54, %p55
      %s57 = ssub.s32 %s23, %s30
      %p58 = scmp.eq.s32.totalorder %s57, 0
      %s60 = sadd.s32 %s59, 1
      %s61 = scalar_select %p58, %s59, %s60
      %p64 = pneg %p58
      %p65 = scmp.eq.s32.totalorder %s23, 1
      %p66 = por %p64, %p65
      %p67 = scmp.ne.s32.totalorder %s59, %s62
      %p68 = scmp.eq.s32.totalorder %s23, 0
      %p69 = por %p67, %p68
      %p70 = scmp.ne.s32.totalorder %s59, %s62
      %p71 = scmp.eq.s32.totalorder %s28, 1
      %p72 = por %p70, %p71
      %p73 = scmp.ne.s32.totalorder %s62, %s63
      %p74 = scmp.eq.s32.totalorder %s28, 0
      %p75 = por %p73, %p74
      %p76 = scmp.ne.s32.totalorder %s62, %s63
      %p77 = scmp.eq.s32.totalorder %s29, 1
      %p78 = por %p76, %p77
      %p80 = scmp.ne.s32.totalorder %s63, %s79
      %p81 = scmp.eq.s32.totalorder %s29, 0
      %p82 = por %p80, %p81
      %s84 = sadd.s32 %s83, 1
      %p87 = scmp.eq.s32.totalorder %s23, 1
      %p88 = scmp.ne.s32.totalorder %s83, %s85
      %p89 = scmp.eq.s32.totalorder %s23, 0
      %p90 = por %p88, %p89
      %p91 = scmp.ne.s32.totalorder %s83, %s85
      %p92 = scmp.eq.s32.totalorder %s28, 1
      %p93 = por %p91, %p92
      %p94 = scmp.ne.s32.totalorder %s85, %s86
      %p95 = scmp.eq.s32.totalorder %s28, 0
      %p96 = por %p94, %p95
      %p97 = scmp.ne.s32.totalorder %s85, %s86
      %p98 = scmp.eq.s32.totalorder %s29, 1
      %p99 = por %p97, %p98
      %p101 = scmp.ne.s32.totalorder %s86, %s100
      %p102 = scmp.eq.s32.totalorder %s29, 0
      %p103 = por %p101, %p102
      %s105 = sadd.s32 %s104, 1
      %p108 = scmp.eq.s32.totalorder %s23, 1
      %p109 = scmp.ne.s32.totalorder %s104, %s106
      %p110 = scmp.eq.s32.totalorder %s23, 0
      %p111 = por %p109, %p110
      %p112 = scmp.ne.s32.totalorder %s104, %s106
      %p113 = scmp.eq.s32.totalorder %s28, 1
      %p114 = por %p112, %p113
      %p115 = scmp.ne.s32.totalorder %s106, %s107
      %p116 = scmp.eq.s32.totalorder %s28, 0
      %p117 = por %p115, %p116
      %p118 = scmp.ne.s32.totalorder %s106, %s107
      %p119 = scmp.eq.s32.totalorder %s29, 1
      %p120 = por %p118, %p119
      %p122 = scmp.ne.s32.totalorder %s107, %s121
      %p123 = scmp.eq.s32.totalorder %s29, 0
      %p124 = por %p122, %p123
      %s126 = sadd.s32 %s125, 1
      %p129 = scmp.eq.s32.totalorder %s23, 1
      %p130 = scmp.ne.s32.totalorder %s125, %s127
      %p131 = scmp.eq.s32.totalorder %s23, 0
      %p132 = por %p130, %p131
      %p133 = scmp.ne.s32.totalorder %s125, %s127
      %p134 = scmp.eq.s32.totalorder %s28, 1
      %p135 = por %p133, %p134
      %p136 = scmp.ne.s32.totalorder %s127, %s128
      %p137 = scmp.eq.s32.totalorder %s28, 0
      %p138 = por %p136, %p137
      %p139 = scmp.ne.s32.totalorder %s127, %s128
      %p140 = scmp.eq.s32.totalorder %s29, 1
      %p141 = por %p139, %p140
      %p143 = scmp.ne.s32.totalorder %s128, %s142
      %p144 = scmp.eq.s32.totalorder %s29, 0
      %p145 = por %p143, %p144
      %s147 = sadd.s32 %s146, 1
      %p150 = scmp.eq.s32.totalorder %s23, 1
      %p151 = scmp.ne.s32.totalorder %s146, %s148
      %p152 = scmp.eq.s32.totalorder %s23, 0
      %p153 = por %p151, %p152
      %p154 = scmp.ne.s32.totalorder %s146, %s148
      %p155 = scmp.eq.s32.totalorder %s28, 1
      %p156 = por %p154, %p155
      %p157 = scmp.ne.s32.totalorder %s148, %s149
      %p158 = scmp.eq.s32.totalorder %s28, 0
      %p159 = por %p157, %p158
      %p160 = scmp.ne.s32.totalorder %s148, %s149
      %p161 = scmp.eq.s32.totalorder %s29, 1
      %p162 = por %p160, %p161
      %p164 = scmp.ne.s32.totalorder %s149, %s163
      %p165 = scmp.eq.s32.totalorder %s29, 0
      %p166 = por %p164, %p165
      %s168 = sadd.s32 %s167, 1
      %p171 = scmp.eq.s32.totalorder %s23, 1
      %p172 = scmp.ne.s32.totalorder %s167, %s169
      %p173 = scmp.eq.s32.totalorder %s23, 0
      %p174 = por %p172, %p173
      %p175 = scmp.ne.s32.totalorder %s167, %s169
      %p176 = scmp.eq.s32.totalorder %s28, 1
      %p177 = por %p175, %p176
      %p178 = scmp.ne.s32.totalorder %s169, %s170
      %p179 = scmp.eq.s32.totalorder %s28, 0
      %p180 = por %p178, %p179
      %p181 = scmp.ne.s32.totalorder %s169, %s170
      %p182 = scmp.eq.s32.totalorder %s29, 1
      %p183 = por %p181, %p182
      %p185 = scmp.ne.s32.totalorder %s170, %s184
      %p186 = scmp.eq.s32.totalorder %s29, 0
      %p187 = por %p185, %p186
      %s188 = ssub.s32 %s23, %s30
      %p189 = scmp.eq.s32.totalorder %s188, 0
      %s191 = sadd.s32 %s190, 1
      %s192 = scalar_select %p189, %s190, %s191
      %p195 = pneg %p189
      %p196 = scmp.eq.s32.totalorder %s23, 1
      %p197 = por %p195, %p196
      %p198 = scmp.ne.s32.totalorder %s190, %s193
      %p199 = scmp.eq.s32.totalorder %s23, 0
      %p200 = por %p198, %p199
      %p201 = scmp.ne.s32.totalorder %s190, %s193
      %p202 = scmp.eq.s32.totalorder %s28, 1
      %p203 = por %p201, %p202
      %p204 = scmp.ne.s32.totalorder %s193, %s194
      %p205 = scmp.eq.s32.totalorder %s28, 0
      %p206 = por %p204, %p205
      %p207 = scmp.ne.s32.totalorder %s193, %s194
      %p208 = scmp.eq.s32.totalorder %s29, 1
      %p209 = por %p207, %p208
      %p211 = scmp.ne.s32.totalorder %s194, %s210
      %p212 = scmp.eq.s32.totalorder %s29, 0
      %p213 = por %p211, %p212
      %p214 = scmp.le.s32.totalorder 1, %s23
      %p215 = scmp.lt.s32.totalorder %s23, 3
      %p216 = pnand %p214, %p215
      %p217 = pneg %p216
      // Predicated region
      $region9: #{tpu_custom_call.1} parent=5 // pred_check
        _
      $region10: #{tpu_custom_call.1} parent=5 // pred_check_branch
        %219 = sbr.rel (%p216) target = $region12
      $region11: #{tpu_custom_call.1} parent=5 // pred_region
        %s220 = ssub.s32 %s23, 1
        // Predicated region
        $region13: #{tpu_custom_call.1} parent=11 // pred_check
          %p221 = pneg %p96
        $region14: #{tpu_custom_call.1} parent=11 // pred_check_branch
          %223 = sbr.rel (%p221) target = $region16
        $region15: #{tpu_custom_call.1} parent=11 // pred_region
          %s225 = ssub.s32 256, 256
          %226 = vsyncadd [#allocation6], %s225
          %s227 = sshll.u32 [#allocation7], 4
          %s228 = int_to_ptr.vmem [resolvable:$true] %s227
          %233 = dma.hbm_to_vmem [thread:$0]  %s2, 256, %s228, [#allocation6], 64, 64, 4
        $region16: #{tpu_custom_call.1} parent=11 // pred_fallthru
          _
        // Predicated region
        $region17: #{tpu_custom_call.1} parent=11 // pred_check
          %p234 = pneg %p117
        $region18: #{tpu_custom_call.1} parent=11 // pred_check_branch
          %236 = sbr.rel (%p234) target = $region20
        $region19: #{tpu_custom_call.1} parent=11 // pred_region
          %s238 = ssub.s32 768, 768
          %239 = vsyncadd [#allocation9], %s238
          %s240 = sshll.u32 [#allocation8], 4
          %s241 = int_to_ptr.vmem [resolvable:$true] %s240
          %246 = dma.hbm_to_vmem [thread:$0]  %s3, 768, %s241, [#allocation9], 64, 64, 4
        $region20: #{tpu_custom_call.1} parent=11 // pred_fallthru
          _
        // Predicated region
        $region21: #{tpu_custom_call.1} parent=11 // pred_check
          %p247 = pneg %p138
        $region22: #{tpu_custom_call.1} parent=11 // pred_check_branch
          %249 = sbr.rel (%p247) target = $region24
        $region23: #{tpu_custom_call.1} parent=11 // pred_region
          _
        $region24: #{tpu_custom_call.1} parent=11 // pred_fallthru
          _
        // Predicated region
        $region25: #{tpu_custom_call.1} parent=11 // pred_check
          %p250 = pneg %p159
        $region26: #{tpu_custom_call.1} parent=11 // pred_check_branch
          %252 = sbr.rel (%p250) target = $region28
        $region27: #{tpu_custom_call.1} parent=11 // pred_region
          _
        $region28: #{tpu_custom_call.1} parent=11 // pred_fallthru
          _
        // Predicated region
        $region29: #{tpu_custom_call.1} parent=11 // pred_check
          %p253 = pneg %p180
        $region30: #{tpu_custom_call.1} parent=11 // pred_check_branch
          %255 = sbr.rel (%p253) target = $region32
        $region31: #{tpu_custom_call.1} parent=11 // pred_region
          _
        $region32: #{tpu_custom_call.1} parent=11 // pred_fallthru
          _
      $region12: #{tpu_custom_call.1} parent=5 // pred_fallthru
        _
      %p256 = scmp.lt.s32.totalorder %s23, 2
      // Predicated region
      $region33: #{tpu_custom_call.1} parent=5 // pred_check
        %p257 = pneg %p256
      $region34: #{tpu_custom_call.1} parent=5 // pred_check_branch
        %259 = sbr.rel (%p257) target = $region36
      $region35: #{tpu_custom_call.1} parent=5 // pred_region
        // Predicated region
        $region37: #{tpu_custom_call.1} parent=35 // pred_check
          %p260 = pneg %p43
        $region38: #{tpu_custom_call.1} parent=35 // pred_check_branch
          %262 = sbr.rel (%p260) target = $region40
        $region39: #{tpu_custom_call.1} parent=35 // pred_region
          %s263 = sand.u32 %s33, 1
          %s264 = scalar_lea.sflag [#allocation3], %s263
          %s265 = sand.u32 %s33, 1
          %s266 = smul.addr %s265, 4
          %s267 = scalar_lea.vmem [#allocation2], %s266
          %s269 = ssub.s32 64, 64
          %270 = vsyncadd %s264, %s269
          %s271 = smul.addr %s23, 64
          %s272 = scalar_lea.hbm %s0, %s271
          %s274 = sshll.u32 %s267, 4
          %s275 = int_to_ptr.vmem [resolvable:$true] %s274
          %277 = dma.hbm_to_vmem [thread:$0]  %s272, 64, %s275, %s264
        $region40: #{tpu_custom_call.1} parent=35 // pred_fallthru
          _
        // Predicated region
        $region41: #{tpu_custom_call.1} parent=35 // pred_check
          %p278 = pneg %p69
        $region42: #{tpu_custom_call.1} parent=35 // pred_check_branch
          %280 = sbr.rel (%p278) target = $region44
        $region43: #{tpu_custom_call.1} parent=35 // pred_region
          %s281 = sand.u32 %s23, 1
          %s282 = scalar_lea.sflag [#allocation6], %s281
          %s283 = sand.u32 %s59, 1
          %s284 = smul.addr %s283, 8
          %s285 = scalar_lea.vmem [#allocation5], %s284
          %s287 = ssub.s32 128, 128
          %288 = vsyncadd %s282, %s287
          %s289 = smul.addr %s23, 128
          %s290 = scalar_lea.hbm %s1, %s289
          %s292 = sshll.u32 %s285, 4
          %s293 = int_to_ptr.vmem [resolvable:$true] %s292
          %295 = dma.hbm_to_vmem [thread:$0]  %s290, 128, %s293, %s282
        $region44: #{tpu_custom_call.1} parent=35 // pred_fallthru
          _
      $region36: #{tpu_custom_call.1} parent=5 // pred_fallthru
        _
      %p296 = scmp.le.s32.totalorder 1, %s23
      %p297 = scmp.lt.s32.totalorder %s23, 3
      %p298 = pnand %p296, %p297
      %p299 = pneg %p298
      // Predicated region
      $region45: #{tpu_custom_call.1} parent=5 // pred_check
        _
      $region46: #{tpu_custom_call.1} parent=5 // pred_check_branch
        %301 = sbr.rel (%p298) target = $region48
      $region47: #{tpu_custom_call.1} parent=5 // pred_region
        %s302 = ssub.s32 %s23, 1
        %s303 = sand.u32 %s36, 1
        %s304 = scalar_lea.sflag [#allocation3], %s303
        %s305 = sand.u32 %s36, 1
        %s306 = smul.addr %s305, 4
        %s307 = scalar_lea.vmem [#allocation2], %s306
        // Predicated region
        $region49: #{tpu_custom_call.1} parent=47 // pred_check
          %p308 = pneg %p49
        $region50: #{tpu_custom_call.1} parent=47 // pred_check_branch
          %310 = sbr.rel (%p308) target = $region52
        $region51: #{tpu_custom_call.1} parent=47 // pred_region
          %311 = dma.done %s304, 64
        $region52: #{tpu_custom_call.1} parent=47 // pred_fallthru
          _
        %s312 = sand.u32 %s28, 1
        %s313 = scalar_lea.sflag [#allocation6], %s312
        %s314 = sand.u32 %s62, 1
        %s315 = smul.addr %s314, 8
        %s316 = scalar_lea.vmem [#allocation5], %s315
        // Predicated region
        $region53: #{tpu_custom_call.1} parent=47 // pred_check
          %p317 = pneg %p75
        $region54: #{tpu_custom_call.1} parent=47 // pred_check_branch
          %319 = sbr.rel (%p317) target = $region56
        $region55: #{tpu_custom_call.1} parent=47 // pred_region
          %320 = dma.done %s313, 128
        $region56: #{tpu_custom_call.1} parent=47 // pred_fallthru
          _
        // Predicated region
        $region57: #{tpu_custom_call.1} parent=47 // pred_check
          %p321 = pneg %p96
        $region58: #{tpu_custom_call.1} parent=47 // pred_check_branch
          %323 = sbr.rel (%p321) target = $region60
        $region59: #{tpu_custom_call.1} parent=47 // pred_region
          %324 = dma.done [#allocation6], 256
        $region60: #{tpu_custom_call.1} parent=47 // pred_fallthru
          _
        // Predicated region
        $region61: #{tpu_custom_call.1} parent=47 // pred_check
          %p325 = pneg %p117
        $region62: #{tpu_custom_call.1} parent=47 // pred_check_branch
          %327 = sbr.rel (%p325) target = $region64
        $region63: #{tpu_custom_call.1} parent=47 // pred_region
          %328 = dma.done [#allocation9], 768
        $region64: #{tpu_custom_call.1} parent=47 // pred_fallthru
          _
        %s329 = sand.u32 %s36, 1
        %s330 = scalar_lea.sflag [#allocation3], %s329
        %s331 = sand.u32 %s36, 1
        %s332 = smul.addr %s331, 4
        %s333 = scalar_lea.vmem [#allocation2], %s332
        %p334 = pneg %p49
        %p335 = pneg %p46
        %s336 = sand.u32 %s28, 1
        %s337 = scalar_lea.sflag [#allocation6], %s336
        %s338 = sand.u32 %s62, 1
        %s339 = smul.addr %s338, 8
        %s340 = scalar_lea.vmem [#allocation5], %s339
        %p341 = pneg %p75
        %p342 = pneg %p72
        %p343 = pneg %p96
        %p344 = pneg %p93
        %p345 = pneg %p117
        %p346 = pneg %p114
        %p347 = pneg %p138
        %p348 = pneg %p135
        %p349 = pneg %p159
        %p350 = pneg %p156
        %p351 = pneg %p180
        %p352 = pneg %p177
        %p353 = pneg %p206
        %p354 = pneg %p203
        %s355 = sand.u32 %s193, 1
        %s356 = scalar_lea.sflag [#allocation4], %s355
        %s357 = sand.u32 %s193, 1
        %s358 = smul.addr %s357, 4
        %s359 = scalar_lea.vmem [#allocation10], %s358
        %v361 = vld [vmem:[%s307] sm:$0x7]
        %v362 = vld [vmem:[%s316] sm:$0xff]
        %v363 = vmul.f32 %v361, 3.1415927
        %v364 = vand.u32 2147483647, %v363
        %vm365 = vcmp.le.f32.partialorder %v364, 0.7853982
        %vm366 = vcmp.lt.s32.totalorder %v363, 0
        %v367 = vand.u32 %v363, 2139095040
        %v368 = vshrl.u32 %v367, 23
        %v369 = vsub.s32 %v368, 127
        %v370 = vand.u32 2147483647, %v363
        %v371 = vand.u32 %v370, 8388607
        %v372 = vor.u32 %v371, 8388608
        %v373 = vsub.s32 0, %v372
        %v374 = vadd.s32 %v369, 1
        %vm375 = vcmp.gt.s32.totalorder %v374, 0
        %v376 = vsel %vm375, %v374, 0
        %v377 = vshrl.u32 %v376, 5
        %v378 = vand.u32 %v376, 31
        %v379 = vsub.s32 32, %v378
        %v380 = vshrl.u32 683565275, %v379
        %v381 = vshll.u32 683565275, %v378
        %v382 = vshrl.u32 2475754826, %v379
        %v383 = vor.u32 %v381, %v382
        %v384 = vshll.u32 2475754826, %v378
        %v385 = vshrl.u32 2131351028, %v379
        %v386 = vor.u32 %v384, %v385
        %v387 = vshll.u32 2131351028, %v378
        %v388 = vshrl.u32 2102212464, %v379
        %v389 = vor.u32 %v387, %v388
        %v390 = vshll.u32 2102212464, %v378
        %v391 = vshrl.u32 920167782, %v379
        %v392 = vor.u32 %v390, %v391
        %v393 = vshll.u32 920167782, %v378
        %v394 = vshrl.u32 1326507024, %v379
        %v395 = vor.u32 %v393, %v394
        %vm396 = vcmp.lt.s32.totalorder %v377, 1
        %vm397 = vcmp.lt.s32.totalorder %v377, 2
        %vm398 = vcmp.lt.s32.totalorder %v377, 3
        %vm399 = vcmp.lt.s32.totalorder %v377, 4
        %v400 = vsel %vm396, %v380, %v383
        %v401 = vsel %vm399, %v389, 2102212464
        %v402 = vsel %vm398, %v386, %v401
        %v403 = vsel %vm397, %v400, %v402
        %v404 = vsel %vm396, %v383, %v386
        %v405 = vsel %vm399, %v392, 920167782
        %v406 = vsel %vm398, %v389, %v405
        %v407 = vsel %vm397, %v404, %v406
        %v408 = vsel %vm396, %v386, %v389
        %v409 = vsel %vm399, %v395, 1326507024
        %v410 = vsel %vm398, %v392, %v409
        %v411 = vsel %vm397, %v408, %v410
        %v412 = vshll.u32 %v372, 8
        %v413 = vmul.u32.u64.compose %v412, %v411
        %v414 = vextract.low.u32 %v413
        %v415 = vextract.high.u32 %v413
        %v416 = vmul.u32.u64.compose %v412, %v407
        %v417 = vextract.low.u32 %v416
        %v418 = vextract.high.u32 %v416
        %v419 = vmul.u32 %v412, %v403
        %v420 = vadd.s32 %v415, %v417
        %vm421 = vc.u32 %v415, %v417
        %v422 = vadd.s32 %v418, 1
        %v423 = vsel %vm421, %v422, %v418
        %v424 = vadd.s32 %v419, %v423
        %v425 = vadd.s32 %v424, 536870912
        %v426 = vshrl.u32 %v425, 30
        %v427 = vshll.u32 %v426, 30
        %v428 = vsub.s32 %v424, %v427
        %vm429 = vcmp.lt.s32.totalorder %v428, 0
        %v430 = vsub.s32 0, %v428
        %v431 = vsel %vm429, %v430, %v428
        %v432 = vclz %v431
        %v433 = vsub.s32 %v432, 2
        %vm434 = vcmp.gt.s32.totalorder 0, %v433
        %v435 = vsel %vm434, 0, %v433
        %v436 = vsub.s32 32, %v435
        %v437 = vshll.u32 %v428, %v435
        %v438 = vshrl.u32 %v420, %v436
        %v439 = vor.u32 %v437, %v438
        %v440 = vsub.s32 4294967266, %v435
        %v441 = vadd.s32 %v440, 127
        %v442 = vshll.u32 %v441, 23
        %v443 = vor.u32 4788187, %v442
        %v444 = vand.u32 2147483647, %v443
        %v446 = vcvt.s32.f32 %v439
        %v447 = vmul.f32 %v446, %v444
        %v448 = vxor.u32 %v447, 2147483648
        %v449 = vsel %vm366, %v448, %v447
        %v450 = vsub.s32 4, %v426
        %v451 = vsel %vm366, %v450, %v426
        %v452 = vsel %vm365, %v363, %v449
        %v453 = vsel %vm365, 0, %v451
        %v454 = vcosq.f32.pop %v452
        %v455 = vsinq.f32.pop %v452
        %vm456 = vweird.f32 %v363
        %v457 = vadd.s32 %v453, 3
        %v458 = vand.u32 %v457, 3
        %vm459 = vcmp.lt.s32.totalorder %v458, 2
        %vm460 = vcmp.eq.s32.totalorder %v458, 0
        %v461 = vxor.u32 %v455, 2147483648
        %v462 = vsel %vm460, %v454, %v461
        %vm463 = vcmp.eq.s32.totalorder %v458, 2
        %v464 = vxor.u32 %v454, 2147483648
        %v465 = vsel %vm463, %v464, %v455
        %v466 = vsel %vm459, %v462, %v465
        %v467 = vsel %vm456, nan, %v466
        %v468 = vand.u32 2147483647, %v363
        %vm469 = vcmp.le.f32.partialorder %v468, 0.7853982
        %vm470 = vcmp.lt.s32.totalorder %v363, 0
        %v471 = vand.u32 %v363, 2139095040
        %v472 = vshrl.u32 %v471, 23
        %v473 = vsub.s32 %v472, 127
        %v474 = vand.u32 2147483647, %v363
        %v475 = vand.u32 %v474, 8388607
        %v476 = vor.u32 %v475, 8388608
        %v477 = vsub.s32 0, %v476
        %v478 = vadd.s32 %v473, 1
        %vm479 = vcmp.gt.s32.totalorder %v478, 0
        %v480 = vsel %vm479, %v478, 0
        %v481 = vshrl.u32 %v480, 5
        %v482 = vand.u32 %v480, 31
        %v483 = vsub.s32 32, %v482
        %v484 = vshrl.u32 683565275, %v483
        %v485 = vshll.u32 683565275, %v482
        %v486 = vshrl.u32 2475754826, %v483
        %v487 = vor.u32 %v485, %v486
        %v488 = vshll.u32 2475754826, %v482
        %v489 = vshrl.u32 2131351028, %v483
        %v490 = vor.u32 %v488, %v489
        %v491 = vshll.u32 2131351028, %v482
        %v492 = vshrl.u32 2102212464, %v483
        %v493 = vor.u32 %v491, %v492
        %v494 = vshll.u32 2102212464, %v482
        %v495 = vshrl.u32 920167782, %v483
        %v496 = vor.u32 %v494, %v495
        %v497 = vshll.u32 920167782, %v482
        %v498 = vshrl.u32 1326507024, %v483
        %v499 = vor.u32 %v497, %v498
        %vm500 = vcmp.lt.s32.totalorder %v481, 1
        %vm501 = vcmp.lt.s32.totalorder %v481, 2
        %vm502 = vcmp.lt.s32.totalorder %v481, 3
        %vm503 = vcmp.lt.s32.totalorder %v481, 4
        %v504 = vsel %vm500, %v484, %v487
        %v505 = vsel %vm503, %v493, 2102212464
        %v506 = vsel %vm502, %v490, %v505
        %v507 = vsel %vm501, %v504, %v506
        %v508 = vsel %vm500, %v487, %v490
        %v509 = vsel %vm503, %v496, 920167782
        %v510 = vsel %vm502, %v493, %v509
        %v511 = vsel %vm501, %v508, %v510
        %v512 = vsel %vm500, %v490, %v493
        %v513 = vsel %vm503, %v499, 1326507024
        %v514 = vsel %vm502, %v496, %v513
        %v515 = vsel %vm501, %v512, %v514
        %v516 = vshll.u32 %v476, 8
        %v517 = vmul.u32.u64.compose %v516, %v515
        %v518 = vextract.low.u32 %v517
        %v519 = vextract.high.u32 %v517
        %v520 = vmul.u32.u64.compose %v516, %v511
        %v521 = vextract.low.u32 %v520
        %v522 = vextract.high.u32 %v520
        %v523 = vmul.u32 %v516, %v507
        %v524 = vadd.s32 %v519, %v521
        %vm525 = vc.u32 %v519, %v521
        %v526 = vadd.s32 %v522, 1
        %v527 = vsel %vm525, %v526, %v522
        %v528 = vadd.s32 %v523, %v527
        %v529 = vadd.s32 %v528, 536870912
        %v530 = vshrl.u32 %v529, 30
        %v531 = vshll.u32 %v530, 30
        %v532 = vsub.s32 %v528, %v531
        %vm533 = vcmp.lt.s32.totalorder %v532, 0
        %v534 = vsub.s32 0, %v532
        %v535 = vsel %vm533, %v534, %v532
        %v536 = vclz %v535
        %v537 = vsub.s32 %v536, 2
        %vm538 = vcmp.gt.s32.totalorder 0, %v537
        %v539 = vsel %vm538, 0, %v537
        %v540 = vsub.s32 32, %v539
        %v541 = vshll.u32 %v532, %v539
        %v542 = vshrl.u32 %v524, %v540
        %v543 = vor.u32 %v541, %v542
        %v544 = vsub.s32 4294967266, %v539
        %v545 = vadd.s32 %v544, 127
        %v546 = vshll.u32 %v545, 23
        %v547 = vor.u32 4788187, %v546
        %v548 = vand.u32 2147483647, %v547
        %v550 = vcvt.s32.f32 %v543
        %v551 = vmul.f32 %v550, %v548
        %v552 = vxor.u32 %v551, 2147483648
        %v553 = vsel %vm470, %v552, %v551
        %v554 = vsub.s32 4, %v530
        %v555 = vsel %vm470, %v554, %v530
        %v556 = vsel %vm469, %v363, %v553
        %v557 = vsel %vm469, 0, %v555
        %v558 = vcosq.f32.pop %v556
        %v559 = vsinq.f32.pop %v556
        %vm560 = vweird.f32 %v363
        %v561 = vand.u32 %v557, 3
        %vm562 = vcmp.lt.s32.totalorder %v561, 2
        %vm563 = vcmp.eq.s32.totalorder %v561, 0
        %v564 = vxor.u32 %v559, 2147483648
        %v565 = vsel %vm563, %v558, %v564
        %vm566 = vcmp.eq.s32.totalorder %v561, 2
        %v567 = vxor.u32 %v558, 2147483648
        %v568 = vsel %vm566, %v567, %v559
        %v569 = vsel %vm562, %v565, %v568
        %v570 = vsel %vm560, nan, %v569
        %v571 = vmul.f32 %v467, %v570
        %v572 = vmul.f32 %v571, 2.0
        %v573 = vmul.f32 %v570, %v570
        %v574 = vmul.f32 %v573, 2.0
        %v575 = vsub.f32 %v574, 1.0
        %v576 = vmul.f32 %v572, %v575
        %v577 = vmul.f32 %v576, 2.0
        %v578 = vmul.f32 %v575, %v575
        %v579 = vmul.f32 %v578, 2.0
        %v580 = vsub.f32 %v579, 1.0
        %v581 = vmul.f32 %v577, %v580
        %v582 = vmul.f32 %v581, 2.0
        %v583 = vmul.f32 %v580, %v580
        %v584 = vmul.f32 %v583, 2.0
        %v585 = vsub.f32 %v584, 1.0
        %v587 = vrot.slane %v570, 5
        %v590 = vrot.slane %v572, 2
        %v593 = vrot.slane %v575, 7
        %v596 = vrot.slane %v577, 4
        %v599 = vrot.slane %v580, 1
        %v602 = vrot.slane %v582, 6
        %v605 = vrot.slane %v585, 3
        %vm607 = vcmask 1042432
        %v608 = vsel %vm607, %v467, %v587
        %vm609 = vcmask 1045504
        %v610 = vsel %vm609, %v608, %v590
        %vm611 = vcmask 1040384
        %v612 = vsel %vm611, %v590, %v593
        %vm613 = vcmask 1043456
        %v614 = vsel %vm613, %v612, %v596
        %vm615 = vcmask 1046528
        %v616 = vsel %vm615, %v614, %v599
        %vm617 = vcmask 1041408
        %v618 = vsel %vm617, %v599, %v602
        %vm619 = vcmask 1044480
        %v620 = vsel %vm619, %v618, %v605
        %v621 = vpack.c.bf16 %v610, %v362
        %v622 = vpack.c.bf16 %v620, %v616
        %v623 = vld [vmem:[#allocation7] sm:$0xf]
        %v624 = vld [vmem:[#allocation7 + $0x4] sm:$0xf]
        %v625 = vld [vmem:[#allocation7 + $0x8] sm:$0xf]
        %v626 = vld [vmem:[#allocation7 + $0xc] sm:$0xf]
        %v631 = vunpack.c.l.b16 %v623
        %v632 = vunpack.c.l.b16 %v624
        %v633 = vunpack.c.l.b16 %v625
        %v634 = vunpack.c.l.b16 %v626
        %v635 = vpack.c.b16 %v632, %v631
        %v636 = vpack.c.b16 %v634, %v633
        %vm637 = vcmask 261120
        %v639 = vsel %vm637, %v635, 0
        %v642 = vsel %vm637, %v636, 0
        %644 = vmatprep.subr.bf16.mxu0 0
        %645 = vmatpush1.bf16.msra.mxu0 %v621
        %646 = vmatprep.subr.bf16.mxu0 0
        %647 = vmatpush1.bf16.msra.mxu0 %v622
        %648 = vmatprep.subr.bf16.mxu0 0
        %649 = vmatpush1.bf16.msra.mxu0 0
        %650 = vmatprep.subr.bf16.mxu0 0
        %651 = vmatpush1.bf16.msra.mxu0 0
        %652 = vmatprep.subr.bf16.mxu0 0
        %653 = vmatpush1.bf16.msra.mxu0 0
        %654 = vmatprep.subr.bf16.mxu0 0
        %655 = vmatpush1.bf16.msra.mxu0 0
        %656 = vmatprep.subr.bf16.mxu0 0
        %657 = vmatpush1.bf16.msra.mxu0 0
        %658 = vmatprep.subr.bf16.mxu0 0
        %659 = vmatpush1.bf16.msra.mxu0 0
        %660 = vmatprep.subr.bf16.mxu0 0
        %661 = vmatpush1.bf16.msra.mxu0 0
        %662 = vmatprep.subr.bf16.mxu0 0
        %663 = vmatpush1.bf16.msra.mxu0 0
        %664 = vmatprep.subr.bf16.mxu0 0
        %665 = vmatpush1.bf16.msra.mxu0 0
        %666 = vmatprep.subr.bf16.mxu0 0
        %667 = vmatpush1.bf16.msra.mxu0 0
        %668 = vmatprep.subr.bf16.mxu0 0
        %669 = vmatpush1.bf16.msra.mxu0 0
        %670 = vmatprep.subr.bf16.mxu0 0
        %671 = vmatpush1.bf16.msra.mxu0 0
        %672 = vmatprep.subr.bf16.mxu0 0
        %673 = vmatpush1.bf16.msra.mxu0 0
        %674 = vmatprep.subr.bf16.mxu0 0
        %675 = vmatpush1.bf16.msra.mxu0 0
        %676 = vmatprep.mubr.bf16.mxu0 0
        %677 = vmatmul.mubr.bf16.gmra.mrb[0].mxu0 %v639
        %v678 = vpop.f32.mrb[0].mxu0
        %v679 = vadd.f32 0.0, %v678
        %v680 = vpop.f32.mrb[0].mxu0
        %v681 = vpop.f32.mrb[0].mxu0
        %v682 = vadd.f32 0.0, %v681
        %v683 = vpop.f32.mrb[0].mxu0
        %684 = vmatprep.mubr.bf16.mxu0 0
        %685 = vmatmul.mubr.bf16.gmra.mrb[0].mxu0 %v642
        %v686 = vpop.f32.mrb[0].mxu0
        %v687 = vadd.f32 0.0, %v686
        %v688 = vpop.f32.mrb[0].mxu0
        %v689 = vpop.f32.mrb[0].mxu0
        %v690 = vadd.f32 0.0, %v689
        %v691 = vpop.f32.mrb[0].mxu0
        %692 = vdwg.mxu0
        %v693 = vmax.f32 %v679, 0.0
        %v694 = vmax.f32 %v682, 0.0
        %v695 = vmax.f32 %v687, 0.0
        %v696 = vmax.f32 %v690, 0.0
        %v697 = vld [vmem:[#allocation8] sm:$0xf]
        %v698 = vld [vmem:[#allocation8 + $0x4] sm:$0xf]
        %v699 = vld [vmem:[#allocation8 + $0x8] sm:$0xf]
        %v700 = vld [vmem:[#allocation8 + $0xc] sm:$0xf]
        %v701 = vpack.c.bf16 %v694, %v693
        %v702 = vpack.c.bf16 %v696, %v695
        %v707 = vunpack.c.l.b16 %v697
        %v708 = vunpack.c.l.b16 %v698
        %v709 = vunpack.c.l.b16 %v699
        %v710 = vunpack.c.l.b16 %v700
        %v711 = vpack.c.b16 %v708, %v707
        %v712 = vpack.c.b16 %v710, %v709
        %v714 = vsel %vm637, %v711, 0
        %v717 = vsel %vm637, %v712, 0
        %719 = vmatprep.subr.bf16.mxu0 0
        %720 = vmatpush1.bf16.msra.mxu0 %v701
        %721 = vmatprep.subr.bf16.mxu0 0
        %722 = vmatpush1.bf16.msra.mxu0 %v702
        %723 = vmatprep.subr.bf16.mxu0 0
        %724 = vmatpush1.bf16.msra.mxu0 0
        %725 = vmatprep.subr.bf16.mxu0 0
        %726 = vmatpush1.bf16.msra.mxu0 0
        %727 = vmatprep.subr.bf16.mxu0 0
        %728 = vmatpush1.bf16.msra.mxu0 0
        %729 = vmatprep.subr.bf16.mxu0 0
        %730 = vmatpush1.bf16.msra.mxu0 0
        %731 = vmatprep.subr.bf16.mxu0 0
        %732 = vmatpush1.bf16.msra.mxu0 0
        %733 = vmatprep.subr.bf16.mxu0 0
        %734 = vmatpush1.bf16.msra.mxu0 0
        %735 = vmatprep.subr.bf16.mxu0 0
        %736 = vmatpush1.bf16.msra.mxu0 0
        %737 = vmatprep.subr.bf16.mxu0 0
        %738 = vmatpush1.bf16.msra.mxu0 0
        %739 = vmatprep.subr.bf16.mxu0 0
        %740 = vmatpush1.bf16.msra.mxu0 0
        %741 = vmatprep.subr.bf16.mxu0 0
        %742 = vmatpush1.bf16.msra.mxu0 0
        %743 = vmatprep.subr.bf16.mxu0 0
        %744 = vmatpush1.bf16.msra.mxu0 0
        %745 = vmatprep.subr.bf16.mxu0 0
        %746 = vmatpush1.bf16.msra.mxu0 0
        %747 = vmatprep.subr.bf16.mxu0 0
        %748 = vmatpush1.bf16.msra.mxu0 0
        %749 = vmatprep.subr.bf16.mxu0 0
        %750 = vmatpush1.bf16.msra.mxu0 0
        %751 = vmatprep.mubr.bf16.mxu0 0
        %752 = vmatmul.mubr.bf16.gmra.mrb[0].mxu0 %v714
        %v753 = vpop.f32.mrb[0].mxu0
        %v754 = vadd.f32 0.0, %v753
        %v755 = vpop.f32.mrb[0].mxu0
        %v756 = vpop.f32.mrb[0].mxu0
        %v757 = vadd.f32 0.0, %v756
        %v758 = vpop.f32.mrb[0].mxu0
        %759 = vmatprep.mubr.bf16.mxu0 0
        %760 = vmatmul.mubr.bf16.gmra.mrb[0].mxu0 %v717
        %v761 = vpop.f32.mrb[0].mxu0
        %v762 = vadd.f32 0.0, %v761
        %v763 = vpop.f32.mrb[0].mxu0
        %v764 = vpop.f32.mrb[0].mxu0
        %v765 = vadd.f32 0.0, %v764
        %v766 = vpop.f32.mrb[0].mxu0
        %767 = vdwg.mxu0
        %v768 = vmax.f32 %v754, 0.0
        %v769 = vmax.f32 %v757, 0.0
        %v770 = vmax.f32 %v762, 0.0
        %v771 = vmax.f32 %v765, 0.0
        %s772 = scalar_lea.vmem [#allocation8], 16
        %v773 = vld [vmem:[%s772] sm:$0xf]
        %v774 = vld [vmem:[%s772 + $0x4] sm:$0xf]
        %v775 = vld [vmem:[%s772 + $0x8] sm:$0xf]
        %v776 = vld [vmem:[%s772 + $0xc] sm:$0xf]
        %v777 = vpack.c.bf16 %v769, %v768
        %v778 = vpack.c.bf16 %v771, %v770
        %v783 = vunpack.c.l.b16 %v773
        %v784 = vunpack.c.l.b16 %v774
        %v785 = vunpack.c.l.b16 %v775
        %v786 = vunpack.c.l.b16 %v776
        %v787 = vpack.c.b16 %v784, %v783
        %v788 = vpack.c.b16 %v786, %v785
        %v790 = vsel %vm637, %v787, 0
        %v793 = vsel %vm637, %v788, 0
        %795 = vmatprep.subr.bf16.mxu0 0
        %796 = vmatpush1.bf16.msra.mxu0 %v777
        %797 = vmatprep.subr.bf16.mxu0 0
        %798 = vmatpush1.bf16.msra.mxu0 %v778
        %799 = vmatprep.subr.bf16.mxu0 0
        %800 = vmatpush1.bf16.msra.mxu0 0
        %801 = vmatprep.subr.bf16.mxu0 0
        %802 = vmatpush1.bf16.msra.mxu0 0
        %803 = vmatprep.subr.bf16.mxu0 0
        %804 = vmatpush1.bf16.msra.mxu0 0
        %805 = vmatprep.subr.bf16.mxu0 0
        %806 = vmatpush1.bf16.msra.mxu0 0
        %807 = vmatprep.subr.bf16.mxu0 0
        %808 = vmatpush1.bf16.msra.mxu0 0
        %809 = vmatprep.subr.bf16.mxu0 0
        %810 = vmatpush1.bf16.msra.mxu0 0
        %811 = vmatprep.subr.bf16.mxu0 0
        %812 = vmatpush1.bf16.msra.mxu0 0
        %813 = vmatprep.subr.bf16.mxu0 0
        %814 = vmatpush1.bf16.msra.mxu0 0
        %815 = vmatprep.subr.bf16.mxu0 0
        %816 = vmatpush1.bf16.msra.mxu0 0
        %817 = vmatprep.subr.bf16.mxu0 0
        %818 = vmatpush1.bf16.msra.mxu0 0
        %819 = vmatprep.subr.bf16.mxu0 0
        %820 = vmatpush1.bf16.msra.mxu0 0
        %821 = vmatprep.subr.bf16.mxu0 0
        %822 = vmatpush1.bf16.msra.mxu0 0
        %823 = vmatprep.subr.bf16.mxu0 0
        %824 = vmatpush1.bf16.msra.mxu0 0
        %825 = vmatprep.subr.bf16.mxu0 0
        %826 = vmatpush1.bf16.msra.mxu0 0
        %827 = vmatprep.mubr.bf16.mxu0 0
        %828 = vmatmul.mubr.bf16.gmra.mrb[0].mxu0 %v790
        %v829 = vpop.f32.mrb[0].mxu0
        %v830 = vadd.f32 0.0, %v829
        %v831 = vpop.f32.mrb[0].mxu0
        %v832 = vpop.f32.mrb[0].mxu0
        %v833 = vadd.f32 0.0, %v832
        %v834 = vpop.f32.mrb[0].mxu0
        %835 = vmatprep.mubr.bf16.mxu0 0
        %836 = vmatmul.mubr.bf16.gmra.mrb[0].mxu0 %v793
        %v837 = vpop.f32.mrb[0].mxu0
        %v838 = vadd.f32 0.0, %v837
        %v839 = vpop.f32.mrb[0].mxu0
        %v840 = vpop.f32.mrb[0].mxu0
        %v841 = vadd.f32 0.0, %v840
        %v842 = vpop.f32.mrb[0].mxu0
        %843 = vdwg.mxu0
        %v844 = vmax.f32 %v830, 0.0
        %v845 = vmax.f32 %v833, 0.0
        %v846 = vmax.f32 %v838, 0.0
        %v847 = vmax.f32 %v841, 0.0
        %s848 = scalar_lea.vmem [#allocation8], 32
        %v849 = vld [vmem:[%s848] sm:$0xf]
        %v850 = vld [vmem:[%s848 + $0x4] sm:$0xf]
        %v851 = vld [vmem:[%s848 + $0x8] sm:$0xf]
        %v852 = vld [vmem:[%s848 + $0xc] sm:$0xf]
        %v853 = vpack.c.bf16 %v845, %v844
        %v854 = vpack.c.bf16 %v847, %v846
        %v859 = vunpack.c.l.b16 %v849
        %v860 = vunpack.c.l.b16 %v850
        %v861 = vunpack.c.l.b16 %v851
        %v862 = vunpack.c.l.b16 %v852
        %v863 = vpack.c.b16 %v860, %v859
        %v864 = vpack.c.b16 %v862, %v861
        %v866 = vsel %vm637, %v863, 0
        %v869 = vsel %vm637, %v864, 0
        %871 = vmatprep.subr.bf16.mxu0 0
        %872 = vmatpush1.bf16.msra.mxu0 %v853
        %873 = vmatprep.subr.bf16.mxu0 0
        %874 = vmatpush1.bf16.msra.mxu0 %v854
        %875 = vmatprep.subr.bf16.mxu0 0
        %876 = vmatpush1.bf16.msra.mxu0 0
        %877 = vmatprep.subr.bf16.mxu0 0
        %878 = vmatpush1.bf16.msra.mxu0 0
        %879 = vmatprep.subr.bf16.mxu0 0
        %880 = vmatpush1.bf16.msra.mxu0 0
        %881 = vmatprep.subr.bf16.mxu0 0
        %882 = vmatpush1.bf16.msra.mxu0 0
        %883 = vmatprep.subr.bf16.mxu0 0
        %884 = vmatpush1.bf16.msra.mxu0 0
        %885 = vmatprep.subr.bf16.mxu0 0
        %886 = vmatpush1.bf16.msra.mxu0 0
        %887 = vmatprep.subr.bf16.mxu0 0
        %888 = vmatpush1.bf16.msra.mxu0 0
        %889 = vmatprep.subr.bf16.mxu0 0
        %890 = vmatpush1.bf16.msra.mxu0 0
        %891 = vmatprep.subr.bf16.mxu0 0
        %892 = vmatpush1.bf16.msra.mxu0 0
        %893 = vmatprep.subr.bf16.mxu0 0
        %894 = vmatpush1.bf16.msra.mxu0 0
        %895 = vmatprep.subr.bf16.mxu0 0
        %896 = vmatpush1.bf16.msra.mxu0 0
        %897 = vmatprep.subr.bf16.mxu0 0
        %898 = vmatpush1.bf16.msra.mxu0 0
        %899 = vmatprep.subr.bf16.mxu0 0
        %900 = vmatpush1.bf16.msra.mxu0 0
        %901 = vmatprep.subr.bf16.mxu0 0
        %902 = vmatpush1.bf16.msra.mxu0 0
        %903 = vmatprep.mubr.bf16.mxu0 0
        %904 = vmatmul.mubr.bf16.gmra.mrb[0].mxu0 %v866
        %v905 = vpop.f32.mrb[0].mxu0
        %v906 = vadd.f32 0.0, %v905
        %v907 = vpop.f32.mrb[0].mxu0
        %v908 = vpop.f32.mrb[0].mxu0
        %v909 = vadd.f32 0.0, %v908
        %v910 = vpop.f32.mrb[0].mxu0
        %911 = vmatprep.mubr.bf16.mxu0 0
        %912 = vmatmul.mubr.bf16.gmra.mrb[0].mxu0 %v869
        %v913 = vpop.f32.mrb[0].mxu0
        %v914 = vadd.f32 0.0, %v913
        %v915 = vpop.f32.mrb[0].mxu0
        %v916 = vpop.f32.mrb[0].mxu0
        %v917 = vadd.f32 0.0, %v916
        %v918 = vpop.f32.mrb[0].mxu0
        %919 = vdwg.mxu0
        %v920 = vmax.f32 %v906, 0.0
        %v921 = vmax.f32 %v909, 0.0
        %v922 = vmax.f32 %v914, 0.0
        %v923 = vmax.f32 %v917, 0.0
        %v924 = vpack.c.bf16 %v921, %v920
        %v925 = vpack.c.bf16 %v923, %v922
        %v926 = vld [vmem:[%s4] sm:$0xf]
        %v927 = vld [vmem:[%s4 + $0x4] sm:$0xf]
        %v928 = vld [vmem:[%s4 + $0x8] sm:$0xf]
        %v929 = vld [vmem:[%s4 + $0xc] sm:$0xf]
        %v930 = vld [vmem:[%s4 + $0x10] sm:$0xf]
        %v931 = vld [vmem:[%s4 + $0x14] sm:$0xf]
        %v932 = vld [vmem:[%s4 + $0x18] sm:$0xf]
        %v933 = vld [vmem:[%s4 + $0x1c] sm:$0xf]
        %v942 = vunpack.c.l.b16 %v926
        %v943 = vunpack.c.l.b16 %v927
        %v944 = vunpack.c.l.b16 %v928
        %v945 = vunpack.c.l.b16 %v929
        %v946 = vunpack.c.l.b16 %v930
        %v947 = vunpack.c.l.b16 %v931
        %v948 = vunpack.c.l.b16 %v932
        %v949 = vunpack.c.l.b16 %v933
        %v950 = vpack.c.b16 %v943, %v942
        %v951 = vpack.c.b16 %v945, %v944
        %v952 = vpack.c.b16 %v947, %v946
        %v953 = vpack.c.b16 %v949, %v948
        %v955 = vsel %vm637, %v950, 0
        %v958 = vsel %vm637, %v951, 0
        %v961 = vsel %vm637, %v952, 0
        %v964 = vsel %vm637, %v953, 0
        %966 = vmatprep.subr.bf16.mxu0 0
        %967 = vmatpush1.bf16.msra.mxu0 %v924
        %968 = vmatprep.subr.bf16.mxu0 0
        %969 = vmatpush1.bf16.msra.mxu0 %v925
        %970 = vmatprep.subr.bf16.mxu0 0
        %971 = vmatpush1.bf16.msra.mxu0 0
        %972 = vmatprep.subr.bf16.mxu0 0
        %973 = vmatpush1.bf16.msra.mxu0 0
        %974 = vmatprep.subr.bf16.mxu0 0
        %975 = vmatpush1.bf16.msra.mxu0 0
        %976 = vmatprep.subr.bf16.mxu0 0
        %977 = vmatpush1.bf16.msra.mxu0 0
        %978 = vmatprep.subr.bf16.mxu0 0
        %979 = vmatpush1.bf16.msra.mxu0 0
        %980 = vmatprep.subr.bf16.mxu0 0
        %981 = vmatpush1.bf16.msra.mxu0 0
        %982 = vmatprep.subr.bf16.mxu0 0
        %983 = vmatpush1.bf16.msra.mxu0 0
        %984 = vmatprep.subr.bf16.mxu0 0
        %985 = vmatpush1.bf16.msra.mxu0 0
        %986 = vmatprep.subr.bf16.mxu0 0
        %987 = vmatpush1.bf16.msra.mxu0 0
        %988 = vmatprep.subr.bf16.mxu0 0
        %989 = vmatpush1.bf16.msra.mxu0 0
        %990 = vmatprep.subr.bf16.mxu0 0
        %991 = vmatpush1.bf16.msra.mxu0 0
        %992 = vmatprep.subr.bf16.mxu0 0
        %993 = vmatpush1.bf16.msra.mxu0 0
        %994 = vmatprep.subr.bf16.mxu0 0
        %995 = vmatpush1.bf16.msra.mxu0 0
        %996 = vmatprep.subr.bf16.mxu0 0
        %997 = vmatpush1.bf16.msra.mxu0 0
        %998 = vmatprep.mubr.bf16.mxu0 0
        %999 = vmatmul.mubr.bf16.gmra.mrb[0].mxu0 %v955
        %v1000 = vpop.f32.mrb[0].mxu0
        %v1001 = vadd.f32 0.0, %v1000
        %v1002 = vpop.f32.mrb[0].mxu0
        %v1003 = vpop.f32.mrb[0].mxu0
        %v1004 = vadd.f32 0.0, %v1003
        %v1005 = vpop.f32.mrb[0].mxu0
        %1006 = vmatprep.mubr.bf16.mxu0 0
        %1007 = vmatmul.mubr.bf16.gmra.mrb[0].mxu0 %v958
        %v1008 = vpop.f32.mrb[0].mxu0
        %v1009 = vadd.f32 0.0, %v1008
        %v1010 = vpop.f32.mrb[0].mxu0
        %v1011 = vpop.f32.mrb[0].mxu0
        %v1012 = vadd.f32 0.0, %v1011
        %v1013 = vpop.f32.mrb[0].mxu0
        %1014 = vmatprep.mubr.bf16.mxu0 0
        %1015 = vmatmul.mubr.bf16.gmra.mrb[0].mxu0 %v961
        %v1016 = vpop.f32.mrb[0].mxu0
        %v1017 = vadd.f32 0.0, %v1016
        %v1018 = vpop.f32.mrb[0].mxu0
        %v1019 = vpop.f32.mrb[0].mxu0
        %v1020 = vadd.f32 0.0, %v1019
        %v1021 = vpop.f32.mrb[0].mxu0
        %1022 = vmatprep.mubr.bf16.mxu0 0
        %1023 = vmatmul.mubr.bf16.gmra.mrb[0].mxu0 %v964
        %v1024 = vpop.f32.mrb[0].mxu0
        %v1025 = vadd.f32 0.0, %v1024
        %v1026 = vpop.f32.mrb[0].mxu0
        %v1027 = vpop.f32.mrb[0].mxu0
        %v1028 = vadd.f32 0.0, %v1027
        %v1029 = vpop.f32.mrb[0].mxu0
        %1030 = vdwg.mxu0
        %v1031 = vmax.f32 %v1001, 0.0
        %v1032 = vmax.f32 %v1004, 0.0
        %v1033 = vmax.f32 %v1009, 0.0
        %v1034 = vmax.f32 %v1012, 0.0
        %v1035 = vmax.f32 %v1017, 0.0
        %v1036 = vmax.f32 %v1020, 0.0
        %v1037 = vmax.f32 %v1025, 0.0
        %v1038 = vmax.f32 %v1028, 0.0
        %v1039 = vld [vmem:[%s5] sm:$0xf]
        %v1040 = vld [vmem:[%s5 + $0x4] sm:$0xf]
        %v1041 = vld [vmem:[%s5 + $0x8] sm:$0xf]
        %v1042 = vld [vmem:[%s5 + $0xc] sm:$0xf]
        %v1043 = vld [vmem:[%s5 + $0x10] sm:$0xf]
        %v1044 = vld [vmem:[%s5 + $0x14] sm:$0xf]
        %v1045 = vld [vmem:[%s5 + $0x18] sm:$0xf]
        %v1046 = vld [vmem:[%s5 + $0x1c] sm:$0xf]
        %v1047 = vpack.c.bf16 %v1032, %v1031
        %v1048 = vpack.c.bf16 %v1034, %v1033
        %v1049 = vpack.c.bf16 %v1036, %v1035
        %v1050 = vpack.c.bf16 %v1038, %v1037
        %v1059 = vunpack.c.l.b16 %v1039
        %v1060 = vunpack.c.l.b16 %v1040
        %v1061 = vunpack.c.l.b16 %v1041
        %v1062 = vunpack.c.l.b16 %v1042
        %v1063 = vunpack.c.l.b16 %v1043
        %v1064 = vunpack.c.l.b16 %v1044
        %v1065 = vunpack.c.l.b16 %v1045
        %v1066 = vunpack.c.l.b16 %v1046
        %v1067 = vpack.c.b16 %v1060, %v1059
        %v1068 = vpack.c.b16 %v1062, %v1061
        %v1069 = vpack.c.b16 %v1064, %v1063
        %v1070 = vpack.c.b16 %v1066, %v1065
        %vm1071 = vcmask 523264
        %v1073 = vsel %vm1071, %v1067, 0
        %v1076 = vsel %vm1071, %v1068, 0
        %v1079 = vsel %vm1071, %v1069, 0
        %v1082 = vsel %vm1071, %v1070, 0
        %1084 = vmatprep.subr.bf16.mxu0 0
        %1085 = vmatpush1.bf16.msra.mxu0 %v1047
        %1086 = vmatprep.subr.bf16.mxu0 0
        %1087 = vmatpush1.bf16.msra.mxu0 %v1048
        %1088 = vmatprep.subr.bf16.mxu0 0
        %1089 = vmatpush1.bf16.msra.mxu0 %v1049
        %1090 = vmatprep.subr.bf16.mxu0 0
        %1091 = vmatpush1.bf16.msra.mxu0 %v1050
        %1092 = vmatprep.subr.bf16.mxu0 0
        %1093 = vmatpush1.bf16.msra.mxu0 0
        %1094 = vmatprep.subr.bf16.mxu0 0
        %1095 = vmatpush1.bf16.msra.mxu0 0
        %1096 = vmatprep.subr.bf16.mxu0 0
        %1097 = vmatpush1.bf16.msra.mxu0 0
        %1098 = vmatprep.subr.bf16.mxu0 0
        %1099 = vmatpush1.bf16.msra.mxu0 0
        %1100 = vmatprep.subr.bf16.mxu0 0
        %1101 = vmatpush1.bf16.msra.mxu0 0
        %1102 = vmatprep.subr.bf16.mxu0 0
        %1103 = vmatpush1.bf16.msra.mxu0 0
        %1104 = vmatprep.subr.bf16.mxu0 0
        %1105 = vmatpush1.bf16.msra.mxu0 0
        %1106 = vmatprep.subr.bf16.mxu0 0
        %1107 = vmatpush1.bf16.msra.mxu0 0
        %1108 = vmatprep.subr.bf16.mxu0 0
        %1109 = vmatpush1.bf16.msra.mxu0 0
        %1110 = vmatprep.subr.bf16.mxu0 0
        %1111 = vmatpush1.bf16.msra.mxu0 0
        %1112 = vmatprep.subr.bf16.mxu0 0
        %1113 = vmatpush1.bf16.msra.mxu0 0
        %1114 = vmatprep.subr.bf16.mxu0 0
        %1115 = vmatpush1.bf16.msra.mxu0 0
        %1116 = vmatprep.mubr.bf16.mxu0 0
        %1117 = vmatmul.mubr.bf16.gmra.mrb[0].mxu0 %v1073
        %v1118 = vpop.f32.mrb[0].mxu0
        %v1119 = vadd.f32 0.0, %v1118
        %v1120 = vpop.f32.mrb[0].mxu0
        %v1121 = vpop.f32.mrb[0].mxu0
        %v1122 = vadd.f32 0.0, %v1121
        %v1123 = vpop.f32.mrb[0].mxu0
        %1124 = vmatprep.mubr.bf16.mxu0 0
        %1125 = vmatmul.mubr.bf16.gmra.mrb[0].mxu0 %v1076
        %v1126 = vpop.f32.mrb[0].mxu0
        %v1127 = vadd.f32 0.0, %v1126
        %v1128 = vpop.f32.mrb[0].mxu0
        %v1129 = vpop.f32.mrb[0].mxu0
        %v1130 = vadd.f32 0.0, %v1129
        %v1131 = vpop.f32.mrb[0].mxu0
        %1132 = vmatprep.mubr.bf16.mxu0 0
        %1133 = vmatmul.mubr.bf16.gmra.mrb[0].mxu0 %v1079
        %v1134 = vpop.f32.mrb[0].mxu0
        %v1135 = vadd.f32 0.0, %v1134
        %v1136 = vpop.f32.mrb[0].mxu0
        %v1137 = vpop.f32.mrb[0].mxu0
        %v1138 = vadd.f32 0.0, %v1137
        %v1139 = vpop.f32.mrb[0].mxu0
        %1140 = vmatprep.mubr.bf16.mxu0 0
        %1141 = vmatmul.mubr.bf16.gmra.mrb[0].mxu0 %v1082
        %v1142 = vpop.f32.mrb[0].mxu0
        %v1143 = vadd.f32 0.0, %v1142
        %v1144 = vpop.f32.mrb[0].mxu0
        %v1145 = vpop.f32.mrb[0].mxu0
        %v1146 = vadd.f32 0.0, %v1145
        %v1147 = vpop.f32.mrb[0].mxu0
        %1148 = vdwg.mxu0
        %v1149 = vmax.f32 %v1119, 0.0
        %v1150 = vmax.f32 %v1122, 0.0
        %v1151 = vmax.f32 %v1127, 0.0
        %v1152 = vmax.f32 %v1130, 0.0
        %v1153 = vmax.f32 %v1135, 0.0
        %v1154 = vmax.f32 %v1138, 0.0
        %v1155 = vmax.f32 %v1143, 0.0
        %v1156 = vmax.f32 %v1146, 0.0
        %s1157 = scalar_lea.vmem %s5, 32
        %v1158 = vld [vmem:[%s1157] sm:$0xf]
        %v1159 = vld [vmem:[%s1157 + $0x4] sm:$0xf]
        %v1160 = vld [vmem:[%s1157 + $0x8] sm:$0xf]
        %v1161 = vld [vmem:[%s1157 + $0xc] sm:$0xf]
        %v1162 = vld [vmem:[%s1157 + $0x10] sm:$0xf]
        %v1163 = vld [vmem:[%s1157 + $0x14] sm:$0xf]
        %v1164 = vld [vmem:[%s1157 + $0x18] sm:$0xf]
        %v1165 = vld [vmem:[%s1157 + $0x1c] sm:$0xf]
        %v1166 = vpack.c.bf16 %v1150, %v1149
        %v1167 = vpack.c.bf16 %v1152, %v1151
        %v1168 = vpack.c.bf16 %v1154, %v1153
        %v1169 = vpack.c.bf16 %v1156, %v1155
        %v1178 = vunpack.c.l.b16 %v1158
        %v1179 = vunpack.c.l.b16 %v1159
        %v1180 = vunpack.c.l.b16 %v1160
        %v1181 = vunpack.c.l.b16 %v1161
        %v1182 = vunpack.c.l.b16 %v1162
        %v1183 = vunpack.c.l.b16 %v1163
        %v1184 = vunpack.c.l.b16 %v1164
        %v1185 = vunpack.c.l.b16 %v1165
        %v1186 = vpack.c.b16 %v1179, %v1178
        %v1187 = vpack.c.b16 %v1181, %v1180
        %v1188 = vpack.c.b16 %v1183, %v1182
        %v1189 = vpack.c.b16 %v1185, %v1184
        %v1191 = vsel %vm1071, %v1186, 0
        %v1194 = vsel %vm1071, %v1187, 0
        %v1197 = vsel %vm1071, %v1188, 0
        %v1200 = vsel %vm1071, %v1189, 0
        %1202 = vmatprep.subr.bf16.mxu0 0
        %1203 = vmatpush1.bf16.msra.mxu0 %v1166
        %1204 = vmatprep.subr.bf16.mxu0 0
        %1205 = vmatpush1.bf16.msra.mxu0 %v1167
        %1206 = vmatprep.subr.bf16.mxu0 0
        %1207 = vmatpush1.bf16.msra.mxu0 %v1168
        %1208 = vmatprep.subr.bf16.mxu0 0
        %1209 = vmatpush1.bf16.msra.mxu0 %v1169
        %1210 = vmatprep.subr.bf16.mxu0 0
        %1211 = vmatpush1.bf16.msra.mxu0 0
        %1212 = vmatprep.subr.bf16.mxu0 0
        %1213 = vmatpush1.bf16.msra.mxu0 0
        %1214 = vmatprep.subr.bf16.mxu0 0
        %1215 = vmatpush1.bf16.msra.mxu0 0
        %1216 = vmatprep.subr.bf16.mxu0 0
        %1217 = vmatpush1.bf16.msra.mxu0 0
        %1218 = vmatprep.subr.bf16.mxu0 0
        %1219 = vmatpush1.bf16.msra.mxu0 0
        %1220 = vmatprep.subr.bf16.mxu0 0
        %1221 = vmatpush1.bf16.msra.mxu0 0
        %1222 = vmatprep.subr.bf16.mxu0 0
        %1223 = vmatpush1.bf16.msra.mxu0 0
        %1224 = vmatprep.subr.bf16.mxu0 0
        %1225 = vmatpush1.bf16.msra.mxu0 0
        %1226 = vmatprep.subr.bf16.mxu0 0
        %1227 = vmatpush1.bf16.msra.mxu0 0
        %1228 = vmatprep.subr.bf16.mxu0 0
        %1229 = vmatpush1.bf16.msra.mxu0 0
        %1230 = vmatprep.subr.bf16.mxu0 0
        %1231 = vmatpush1.bf16.msra.mxu0 0
        %1232 = vmatprep.subr.bf16.mxu0 0
        %1233 = vmatpush1.bf16.msra.mxu0 0
        %1234 = vmatprep.mubr.bf16.mxu0 0
        %1235 = vmatmul.mubr.bf16.gmra.mrb[0].mxu0 %v1191
        %v1236 = vpop.f32.mrb[0].mxu0
        %v1237 = vadd.f32 0.0, %v1236
        %v1238 = vpop.f32.mrb[0].mxu0
        %v1239 = vpop.f32.mrb[0].mxu0
        %v1240 = vadd.f32 0.0, %v1239
        %v1241 = vpop.f32.mrb[0].mxu0
        %1242 = vmatprep.mubr.bf16.mxu0 0
        %1243 = vmatmul.mubr.bf16.gmra.mrb[0].mxu0 %v1194
        %v1244 = vpop.f32.mrb[0].mxu0
        %v1245 = vadd.f32 0.0, %v1244
        %v1246 = vpop.f32.mrb[0].mxu0
        %v1247 = vpop.f32.mrb[0].mxu0
        %v1248 = vadd.f32 0.0, %v1247
        %v1249 = vpop.f32.mrb[0].mxu0
        %1250 = vmatprep.mubr.bf16.mxu0 0
        %1251 = vmatmul.mubr.bf16.gmra.mrb[0].mxu0 %v1197
        %v1252 = vpop.f32.mrb[0].mxu0
        %v1253 = vadd.f32 0.0, %v1252
        %v1254 = vpop.f32.mrb[0].mxu0
        %v1255 = vpop.f32.mrb[0].mxu0
        %v1256 = vadd.f32 0.0, %v1255
        %v1257 = vpop.f32.mrb[0].mxu0
        %1258 = vmatprep.mubr.bf16.mxu0 0
        %1259 = vmatmul.mubr.bf16.gmra.mrb[0].mxu0 %v1200
        %v1260 = vpop.f32.mrb[0].mxu0
        %v1261 = vadd.f32 0.0, %v1260
        %v1262 = vpop.f32.mrb[0].mxu0
        %v1263 = vpop.f32.mrb[0].mxu0
        %v1264 = vadd.f32 0.0, %v1263
        %v1265 = vpop.f32.mrb[0].mxu0
        %1266 = vdwg.mxu0
        %v1267 = vmax.f32 %v1237, 0.0
        %v1268 = vmax.f32 %v1240, 0.0
        %v1269 = vmax.f32 %v1245, 0.0
        %v1270 = vmax.f32 %v1248, 0.0
        %v1271 = vmax.f32 %v1253, 0.0
        %v1272 = vmax.f32 %v1256, 0.0
        %v1273 = vmax.f32 %v1261, 0.0
        %v1274 = vmax.f32 %v1264, 0.0
        %v1275 = vld [vmem:[%s6] sm:$0x7]
        %v1276 = vpack.c.bf16 %v1268, %v1267
        %v1277 = vpack.c.bf16 %v1270, %v1269
        %v1278 = vpack.c.bf16 %v1272, %v1271
        %v1279 = vpack.c.bf16 %v1274, %v1273
        %v1281 = vsel %vm1071, %v1275, 0
        %1283 = vmatprep.subr.bf16.mxu0 0
        %1284 = vmatpush1.bf16.msra.mxu0 %v1276
        %1285 = vmatprep.subr.bf16.mxu0 0
        %1286 = vmatpush1.bf16.msra.mxu0 %v1277
        %1287 = vmatprep.subr.bf16.mxu0 0
        %1288 = vmatpush1.bf16.msra.mxu0 %v1278
        %1289 = vmatprep.subr.bf16.mxu0 0
        %1290 = vmatpush1.bf16.msra.mxu0 %v1279
        %1291 = vmatprep.subr.bf16.mxu0 0
        %1292 = vmatpush1.bf16.msra.mxu0 0
        %1293 = vmatprep.subr.bf16.mxu0 0
        %1294 = vmatpush1.bf16.msra.mxu0 0
        %1295 = vmatprep.subr.bf16.mxu0 0
        %1296 = vmatpush1.bf16.msra.mxu0 0
        %1297 = vmatprep.subr.bf16.mxu0 0
        %1298 = vmatpush1.bf16.msra.mxu0 0
        %1299 = vmatprep.subr.bf16.mxu0 0
        %1300 = vmatpush1.bf16.msra.mxu0 0
        %1301 = vmatprep.subr.bf16.mxu0 0
        %1302 = vmatpush1.bf16.msra.mxu0 0
        %1303 = vmatprep.subr.bf16.mxu0 0
        %1304 = vmatpush1.bf16.msra.mxu0 0
        %1305 = vmatprep.subr.bf16.mxu0 0
        %1306 = vmatpush1.bf16.msra.mxu0 0
        %1307 = vmatprep.subr.bf16.mxu0 0
        %1308 = vmatpush1.bf16.msra.mxu0 0
        %1309 = vmatprep.subr.bf16.mxu0 0
        %1310 = vmatpush1.bf16.msra.mxu0 0
        %1311 = vmatprep.subr.bf16.mxu0 0
        %1312 = vmatpush1.bf16.msra.mxu0 0
        %1313 = vmatprep.subr.bf16.mxu0 0
        %1314 = vmatpush1.bf16.msra.mxu0 0
        %1315 = vmatprep.mubr.bf16.mxu0 0
        %1316 = vmatmul.mubr.bf16.gmra.mrb[0].mxu0 %v1281
        %v1317 = vpop.f32.mrb[0].mxu0
        %v1318 = vadd.f32 0.0, %v1317
        %v1319 = vpop.f32.mrb[0].mxu0
        %v1320 = vpop.f32.mrb[0].mxu0
        %v1321 = vpop.f32.mrb[0].mxu0
        %1322 = vdwg.mxu0
        %v1324 = vrot.slane %v1318, 1
        %v1326 = vrot.slane %v1318, 6
        %v1328 = vsel %vm617, %v1324, %v1326
        %v1329 = vrot.slane %v1318, 2
        %v1331 = vrot.slane %v1318, 7
        %v1333 = vsel %vm611, %v1329, %v1331
        %v1335 = vrot.slane %v361, 2
        %v1337 = vrot.slane %v361, 7
        %v1339 = vsel %vm611, %v1335, %v1337
        %v1340 = vmul.f32 %v1328, %v1339
        %v1341 = vrot.slane %v361, 1
        %v1343 = vrot.slane %v361, 6
        %v1345 = vsel %vm617, %v1341, %v1343
        %v1346 = vmul.f32 %v1333, %v1345
        %v1347 = vsub.f32 %v1340, %v1346
        %v1349 = vrot.slane %v1347, 2
        %v1351 = vrot.slane %v1347, 7
        %v1353 = vsel %vm611, %v1349, %v1351
        %v1354 = vmul.f32 %v1328, %v1353
        %v1355 = vrot.slane %v1347, 1
        %v1357 = vrot.slane %v1347, 6
        %v1359 = vsel %vm617, %v1355, %v1357
        %v1360 = vmul.f32 %v1333, %v1359
        %v1361 = vsub.f32 %v1354, %v1360
        %v1362 = vrot.slane %v1318, 5
        %v1364 = vsel %vm611, %v1362, %v1329
        %v1365 = vmul.f32 %v1328, %v1364
        %v1366 = vrot.slane %v1318, 4
        %v1368 = vsel %vm617, %v1366, %v1324
        %v1369 = vmul.f32 %v1333, %v1368
        %v1370 = vsub.f32 %v1365, %v1369
        %v1372 = vrot.slane %v1370, 2
        %v1374 = vrot.slane %v1370, 7
        %v1376 = vsel %vm611, %v1372, %v1374
        %v1377 = vmul.f32 %v1328, %v1376
        %v1378 = vrot.slane %v1370, 1
        %v1380 = vrot.slane %v1370, 6
        %v1382 = vsel %vm617, %v1378, %v1380
        %v1383 = vmul.f32 %v1333, %v1382
        %v1384 = vsub.f32 %v1377, %v1383
        %v1385 = vmul.f32 %v1318, %v1318
        %v1386 = vsel %vm607, %v1385, 0.0
        %v1387 = vrot.slane %v1386, 4
        %v1388 = vadd.f32 %v1386, %v1387
        %v1389 = vrot.slane %v1388, 2
        %v1390 = vadd.f32 %v1388, %v1389
        %v1391 = vrot.slane %v1390, 1
        %v1392 = vadd.f32 %v1390, %v1391
        %v1393 = vmax.f32 %v1392, 0.0001
        %v1394 = vrsqrt.pop %v1393
        %v1395 = vmul.f32 %v1393, %v1394
        %v1396 = vand.u32 2147483647, %v1395
        %vm1397 = vcmp.le.f32.partialorder %v1396, 0.7853982
        %vm1398 = vcmp.lt.s32.totalorder %v1395, 0
        %v1399 = vand.u32 %v1395, 2139095040
        %v1400 = vshrl.u32 %v1399, 23
        %v1401 = vsub.s32 %v1400, 127
        %v1402 = vand.u32 2147483647, %v1395
        %v1403 = vand.u32 %v1402, 8388607
        %v1404 = vor.u32 %v1403, 8388608
        %v1405 = vsub.s32 0, %v1404
        %v1406 = vadd.s32 %v1401, 1
        %vm1407 = vcmp.gt.s32.totalorder %v1406, 0
        %v1408 = vsel %vm1407, %v1406, 0
        %v1409 = vshrl.u32 %v1408, 5
        %v1410 = vand.u32 %v1408, 31
        %v1411 = vsub.s32 32, %v1410
        %v1412 = vshrl.u32 683565275, %v1411
        %v1413 = vshll.u32 683565275, %v1410
        %v1414 = vshrl.u32 2475754826, %v1411
        %v1415 = vor.u32 %v1413, %v1414
        %v1416 = vshll.u32 2475754826, %v1410
        %v1417 = vshrl.u32 2131351028, %v1411
        %v1418 = vor.u32 %v1416, %v1417
        %v1419 = vshll.u32 2131351028, %v1410
        %v1420 = vshrl.u32 2102212464, %v1411
        %v1421 = vor.u32 %v1419, %v1420
        %v1422 = vshll.u32 2102212464, %v1410
        %v1423 = vshrl.u32 920167782, %v1411
        %v1424 = vor.u32 %v1422, %v1423
        %v1425 = vshll.u32 920167782, %v1410
        %v1426 = vshrl.u32 1326507024, %v1411
        %v1427 = vor.u32 %v1425, %v1426
        %vm1428 = vcmp.lt.s32.totalorder %v1409, 1
        %vm1429 = vcmp.lt.s32.totalorder %v1409, 2
        %vm1430 = vcmp.lt.s32.totalorder %v1409, 3
        %vm1431 = vcmp.lt.s32.totalorder %v1409, 4
        %v1432 = vsel %vm1428, %v1412, %v1415
        %v1433 = vsel %vm1431, %v1421, 2102212464
        %v1434 = vsel %vm1430, %v1418, %v1433
        %v1435 = vsel %vm1429, %v1432, %v1434
        %v1436 = vsel %vm1428, %v1415, %v1418
        %v1437 = vsel %vm1431, %v1424, 920167782
        %v1438 = vsel %vm1430, %v1421, %v1437
        %v1439 = vsel %vm1429, %v1436, %v1438
        %v1440 = vsel %vm1428, %v1418, %v1421
        %v1441 = vsel %vm1431, %v1427, 1326507024
        %v1442 = vsel %vm1430, %v1424, %v1441
        %v1443 = vsel %vm1429, %v1440, %v1442
        %v1444 = vshll.u32 %v1404, 8
        %v1445 = vmul.u32.u64.compose %v1444, %v1443
        %v1446 = vextract.low.u32 %v1445
        %v1447 = vextract.high.u32 %v1445
        %v1448 = vmul.u32.u64.compose %v1444, %v1439
        %v1449 = vextract.low.u32 %v1448
        %v1450 = vextract.high.u32 %v1448
        %v1451 = vmul.u32 %v1444, %v1435
        %v1452 = vadd.s32 %v1447, %v1449
        %vm1453 = vc.u32 %v1447, %v1449
        %v1454 = vadd.s32 %v1450, 1
        %v1455 = vsel %vm1453, %v1454, %v1450
        %v1456 = vadd.s32 %v1451, %v1455
        %v1457 = vadd.s32 %v1456, 536870912
        %v1458 = vshrl.u32 %v1457, 30
        %v1459 = vshll.u32 %v1458, 30
        %v1460 = vsub.s32 %v1456, %v1459
        %vm1461 = vcmp.lt.s32.totalorder %v1460, 0
        %v1462 = vsub.s32 0, %v1460
        %v1463 = vsel %vm1461, %v1462, %v1460
        %v1464 = vclz %v1463
        %v1465 = vsub.s32 %v1464, 2
        %vm1466 = vcmp.gt.s32.totalorder 0, %v1465
        %v1467 = vsel %vm1466, 0, %v1465
        %v1468 = vsub.s32 32, %v1467
        %v1469 = vshll.u32 %v1460, %v1467
        %v1470 = vshrl.u32 %v1452, %v1468
        %v1471 = vor.u32 %v1469, %v1470
        %v1472 = vsub.s32 4294967266, %v1467
        %v1473 = vadd.s32 %v1472, 127
        %v1474 = vshll.u32 %v1473, 23
        %v1475 = vor.u32 4788187, %v1474
        %v1476 = vand.u32 2147483647, %v1475
        %v1478 = vcvt.s32.f32 %v1471
        %v1479 = vmul.f32 %v1478, %v1476
        %v1480 = vxor.u32 %v1479, 2147483648
        %v1481 = vsel %vm1398, %v1480, %v1479
        %v1482 = vsub.s32 4, %v1458
        %v1483 = vsel %vm1398, %v1482, %v1458
        %v1484 = vsel %vm1397, %v1395, %v1481
        %v1485 = vsel %vm1397, 0, %v1483
        %v1486 = vcosq.f32.pop %v1484
        %v1487 = vsinq.f32.pop %v1484
        %vm1488 = vweird.f32 %v1395
        %v1489 = vadd.s32 %v1485, 3
        %v1490 = vand.u32 %v1489, 3
        %vm1491 = vcmp.lt.s32.totalorder %v1490, 2
        %vm1492 = vcmp.eq.s32.totalorder %v1490, 0
        %v1493 = vxor.u32 %v1487, 2147483648
        %v1494 = vsel %vm1492, %v1486, %v1493
        %vm1495 = vcmp.eq.s32.totalorder %v1490, 2
        %v1496 = vxor.u32 %v1486, 2147483648
        %v1497 = vsel %vm1495, %v1496, %v1487
        %v1498 = vsel %vm1491, %v1494, %v1497
        %v1499 = vsel %vm1488, nan, %v1498
        %v1500 = vand.u32 2147483647, %v1395
        %vm1501 = vcmp.le.f32.partialorder %v1500, 0.7853982
        %vm1502 = vcmp.lt.s32.totalorder %v1395, 0
        %v1503 = vand.u32 %v1395, 2139095040
        %v1504 = vshrl.u32 %v1503, 23
        %v1505 = vsub.s32 %v1504, 127
        %v1506 = vand.u32 2147483647, %v1395
        %v1507 = vand.u32 %v1506, 8388607
        %v1508 = vor.u32 %v1507, 8388608
        %v1509 = vsub.s32 0, %v1508
        %v1510 = vadd.s32 %v1505, 1
        %vm1511 = vcmp.gt.s32.totalorder %v1510, 0
        %v1512 = vsel %vm1511, %v1510, 0
        %v1513 = vshrl.u32 %v1512, 5
        %v1514 = vand.u32 %v1512, 31
        %v1515 = vsub.s32 32, %v1514
        %v1516 = vshrl.u32 683565275, %v1515
        %v1517 = vshll.u32 683565275, %v1514
        %v1518 = vshrl.u32 2475754826, %v1515
        %v1519 = vor.u32 %v1517, %v1518
        %v1520 = vshll.u32 2475754826, %v1514
        %v1521 = vshrl.u32 2131351028, %v1515
        %v1522 = vor.u32 %v1520, %v1521
        %v1523 = vshll.u32 2131351028, %v1514
        %v1524 = vshrl.u32 2102212464, %v1515
        %v1525 = vor.u32 %v1523, %v1524
        %v1526 = vshll.u32 2102212464, %v1514
        %v1527 = vshrl.u32 920167782, %v1515
        %v1528 = vor.u32 %v1526, %v1527
        %v1529 = vshll.u32 920167782, %v1514
        %v1530 = vshrl.u32 1326507024, %v1515
        %v1531 = vor.u32 %v1529, %v1530
        %vm1532 = vcmp.lt.s32.totalorder %v1513, 1
        %vm1533 = vcmp.lt.s32.totalorder %v1513, 2
        %vm1534 = vcmp.lt.s32.totalorder %v1513, 3
        %vm1535 = vcmp.lt.s32.totalorder %v1513, 4
        %v1536 = vsel %vm1532, %v1516, %v1519
        %v1537 = vsel %vm1535, %v1525, 2102212464
        %v1538 = vsel %vm1534, %v1522, %v1537
        %v1539 = vsel %vm1533, %v1536, %v1538
        %v1540 = vsel %vm1532, %v1519, %v1522
        %v1541 = vsel %vm1535, %v1528, 920167782
        %v1542 = vsel %vm1534, %v1525, %v1541
        %v1543 = vsel %vm1533, %v1540, %v1542
        %v1544 = vsel %vm1532, %v1522, %v1525
        %v1545 = vsel %vm1535, %v1531, 1326507024
        %v1546 = vsel %vm1534, %v1528, %v1545
        %v1547 = vsel %vm1533, %v1544, %v1546
        %v1548 = vshll.u32 %v1508, 8
        %v1549 = vmul.u32.u64.compose %v1548, %v1547
        %v1550 = vextract.low.u32 %v1549
        %v1551 = vextract.high.u32 %v1549
        %v1552 = vmul.u32.u64.compose %v1548, %v1543
        %v1553 = vextract.low.u32 %v1552
        %v1554 = vextract.high.u32 %v1552
        %v1555 = vmul.u32 %v1548, %v1539
        %v1556 = vadd.s32 %v1551, %v1553
        %vm1557 = vc.u32 %v1551, %v1553
        %v1558 = vadd.s32 %v1554, 1
        %v1559 = vsel %vm1557, %v1558, %v1554
        %v1560 = vadd.s32 %v1555, %v1559
        %v1561 = vadd.s32 %v1560, 536870912
        %v1562 = vshrl.u32 %v1561, 30
        %v1563 = vshll.u32 %v1562, 30
        %v1564 = vsub.s32 %v1560, %v1563
        %vm1565 = vcmp.lt.s32.totalorder %v1564, 0
        %v1566 = vsub.s32 0, %v1564
        %v1567 = vsel %vm1565, %v1566, %v1564
        %v1568 = vclz %v1567
        %v1569 = vsub.s32 %v1568, 2
        %vm1570 = vcmp.gt.s32.totalorder 0, %v1569
        %v1571 = vsel %vm1570, 0, %v1569
        %v1572 = vsub.s32 32, %v1571
        %v1573 = vshll.u32 %v1564, %v1571
        %v1574 = vshrl.u32 %v1556, %v1572
        %v1575 = vor.u32 %v1573, %v1574
        %v1576 = vsub.s32 4294967266, %v1571
        %v1577 = vadd.s32 %v1576, 127
        %v1578 = vshll.u32 %v1577, 23
        %v1579 = vor.u32 4788187, %v1578
        %v1580 = vand.u32 2147483647, %v1579
        %v1582 = vcvt.s32.f32 %v1575
        %v1583 = vmul.f32 %v1582, %v1580
        %v1584 = vxor.u32 %v1583, 2147483648
        %v1585 = vsel %vm1502, %v1584, %v1583
        %v1586 = vsub.s32 4, %v1562
        %v1587 = vsel %vm1502, %v1586, %v1562
        %v1588 = vsel %vm1501, %v1395, %v1585
        %v1589 = vsel %vm1501, 0, %v1587
        %v1590 = vcosq.f32.pop %v1588
        %v1591 = vsinq.f32.pop %v1588
        %vm1592 = vweird.f32 %v1395
        %v1593 = vand.u32 %v1589, 3
        %vm1594 = vcmp.lt.s32.totalorder %v1593, 2
        %vm1595 = vcmp.eq.s32.totalorder %v1593, 0
        %v1596 = vxor.u32 %v1591, 2147483648
        %v1597 = vsel %vm1595, %v1590, %v1596
        %vm1598 = vcmp.eq.s32.totalorder %v1593, 2
        %v1599 = vxor.u32 %v1590, 2147483648
        %v1600 = vsel %vm1598, %v1599, %v1591
        %v1601 = vsel %vm1594, %v1597, %v1600
        %v1602 = vsel %vm1592, nan, %v1601
        %v1603 = vmul.f32 %v1394, %v1394
        %v1604 = vmul.f32 %v1499, %v1394
        %v1605 = vsub.f32 1.0, %v1602
        %v1606 = vmul.f32 %v1605, %v1603
        %v1607 = vsub.f32 %v1395, %v1499
        %v1608 = vmul.f32 %v1607, %v1603
        %v1609 = vmul.f32 %v1608, %v1394
        %v1610 = vmul.f32 %v1604, %v1347
        %v1611 = vsub.f32 %v361, %v1610
        %v1612 = vmul.f32 %v1606, %v1361
        %v1613 = vadd.f32 %v1611, %v1612
        %v1614 = vmul.f32 %v1606, %v1370
        %v1616 = vrot.slane %v1614, 5
        %v1618 = vsub.f32 %v1318, %v1616
        %v1619 = vmul.f32 %v1609, %v1384
        %v1621 = vrot.slane %v1619, 5
        %v1623 = vadd.f32 %v1618, %v1621
        %v1625 = vrot.slane %v1623, 3
        %v1627 = vadd.f32 %v1613, %v1625
        %vm1628 = vcmp.ne.f32.partialorder %v1627, %v1627
        %v1629 = vsel %vm1628, %v361, %v1627
        %1630 = vst [vmem:[%s359] sm:$0x7] %v1629
        %s1631 = sand.u32 %s193, 1
        %s1632 = scalar_lea.sflag [#allocation4], %s1631
        %s1633 = sand.u32 %s193, 1
        %s1634 = smul.addr %s1633, 4
        %s1635 = scalar_lea.vmem [#allocation10], %s1634
        // Predicated region
        $region65: #{tpu_custom_call.1} parent=47 // pred_check
          %p1636 = pneg %p203
        $region66: #{tpu_custom_call.1} parent=47 // pred_check_branch
          %1638 = sbr.rel (%p1636) target = $region68
        $region67: #{tpu_custom_call.1} parent=47 // pred_region
          %s1640 = ssub.s32 64, 64
          %1641 = vsyncadd %s1632, %s1640
          %s1642 = smul.addr %s28, 64
          %s1643 = scalar_lea.hbm %s7, %s1642
          %s1645 = sshll.u32 %s1635, 4
          %s1646 = int_to_ptr.vmem [resolvable:$true] %s1645
          %1648 = dma.vmem_to_hbm [thread:$0]  %s1646, 64, %s1643, %s1632
        $region68: #{tpu_custom_call.1} parent=47 // pred_fallthru
          _
      $region48: #{tpu_custom_call.1} parent=5 // pred_fallthru
        _
      %p1649 = scmp.le.s32.totalorder 2, %s23
      // Predicated region
      $region69: #{tpu_custom_call.1} parent=5 // pred_check
        %p1650 = pneg %p1649
      $region70: #{tpu_custom_call.1} parent=5 // pred_check_branch
        %1652 = sbr.rel (%p1650) target = $region72
      $region71: #{tpu_custom_call.1} parent=5 // pred_region
        %s1653 = ssub.s32 %s23, 2
        // Predicated region
        $region73: #{tpu_custom_call.1} parent=71 // pred_check
          %p1654 = pneg %p209
        $region74: #{tpu_custom_call.1} parent=71 // pred_check_branch
          %1656 = sbr.rel (%p1654) target = $region76
        $region75: #{tpu_custom_call.1} parent=71 // pred_region
          %s1657 = sand.u32 %s194, 1
          %s1658 = scalar_lea.sflag [#allocation4], %s1657
          %s1659 = sand.u32 %s194, 1
          %s1660 = smul.addr %s1659, 4
          %s1661 = scalar_lea.vmem [#allocation10], %s1660
          %1662 = dma.done %s1658, 64
        $region76: #{tpu_custom_call.1} parent=71 // pred_fallthru
          _
      $region72: #{tpu_custom_call.1} parent=5 // pred_fallthru
        _
    $region6: #{tpu_custom_call.1} parent=1 // loop_footer
      %s27 = sadd.s32 1, %s23
    $region7: #{tpu_custom_call.1} parent=1 // loop_footer_branch
      %22 = sbr.rel target = $region3
    $region8: #{tpu_custom_call.1} parent=1 // loop_exit
      _
    %1663 = vsyncpa [#allocation3], 1
    %s1664 = scalar_lea.sflag [#allocation3], 1
    %1665 = vsyncpa %s1664, 1
    %1666 = vsyncpa [#allocation6], 1
    %s1667 = scalar_lea.sflag [#allocation6], 1
    %1668 = vsyncpa %s1667, 1
    %1669 = vsyncpa [#allocation9], 1
    %1670 = vsyncpa [#allocation4], 1
    %s1671 = scalar_lea.sflag [#allocation4], 1
    %1672 = vsyncpa %s1671, 1

</llo_original>
